<compile_context>
chip_gen: v7x
topology: tpu7x:2x2x1
jax: 0.10.0
libtpu: 0.0.40
codegen_flags: <defaults>
</compile_context>

<pallas_src>
import functools

import jax
import jax.numpy as jnp
from jax import lax
from jax.experimental import pallas as pl
from jax.experimental.pallas import tpu as pltpu

EPS = 1e-5


def single_layer_kernel(x_ref, bn_ref, w_ref, o_ref, *, H, W):
    # x_ref : (C, N*H*W)      input, f32, spatial+batch on lanes
    # bn_ref: (C, 2)          folded BN: [:, 0] = scale, [:, 1] = shift
    # w_ref : (9*G, C)        conv weight, tap-major:
    #                         w_ref[k*G + g, c] = weight[g, c, dy, dx], k = dy*3 + dx
    # o_ref : (C+G, N*H*W)    concat([x, conv3x3(relu(bn(x)))], channel axis)
    C, NHW = x_ref.shape
    G = o_ref.shape[0] - C

    x = x_ref[...]                                             # (C, NHW) f32

    # Folded BatchNorm + ReLU (f32 elementwise; safe on all TPU generations).
    scale = bn_ref[:, 0:1]                                     # (C, 1)
    shift = bn_ref[:, 1:2]                                     # (C, 1)
    a = jnp.maximum(x * scale + shift, 0.0)                    # (C, NHW)

    # Per-lane within-image (row, col) for the conv-padding masks, built
    # in-kernel (no mask input). H and W are powers of two in this model.
    lane = lax.broadcasted_iota(jnp.int32, (1, NHW), 1)
    if (W & (W - 1)) == 0 and (H & (H - 1)) == 0:
        col = lane & (W - 1)
        row = (lane >> (W.bit_length() - 1)) & (H - 1)
    else:
        col = lane % W
        row = (lane // W) % H

    # 3x3 conv = 9 accumulated MXU dots, one per tap.  Tap (dy, dx) needs
    # a[y+dy-1, x+dx-1]: in the flattened layout that is a lane roll by
    # s = (dy-1)*W + (dx-1).  Positions that would read the conv's zero
    # padding (and, equivalently, anything that rolled across an image or
    # batch boundary) are zeroed by the per-tap mask.
    acc = jnp.zeros((G, NHW), dtype=jnp.float32)
    for dy in range(3):
        for dx in range(3):
            k = dy * 3 + dx
            s = (dy - 1) * W + (dx - 1)
            tap = a if s == 0 else pltpu.roll(a, shift=(-s) % NHW, axis=1)

            valid = None
            if dy == 0:
                valid = row >= 1
            elif dy == 2:
                valid = row <= H - 2
            if dx == 0:
                m = col >= 1
                valid = m if valid is None else (valid & m)
            elif dx == 2:
                m = col <= W - 2
                valid = m if valid is None else (valid & m)
            if valid is not None:
                tap = jnp.where(valid, tap, 0.0)               # (C, NHW)

            w_k = w_ref[k * G:(k + 1) * G, :]                  # (G, C), static
            acc = acc + jnp.dot(w_k, tap,
                                preferred_element_type=jnp.float32)

    # Channel concat as two lane-dense slice stores (no sublane concatenate).
    o_ref[0:C, :] = x.astype(o_ref.dtype)
    o_ref[C:, :] = acc.astype(o_ref.dtype)


@jax.jit
def single_layer_forward(x_nchw, gamma, beta, running_mean, running_var, weight):
    """x_nchw: (N, C, H, W); weight: (G, C, 3, 3) (PyTorch layout).
    Returns (N, C + G, H, W), matching torch.cat((x, conv_out), 1)."""
    N, C, H, W = x_nchw.shape
    G = weight.shape[0]
    NHW = N * H * W

    # Lane-dense, batch-merged layout: channels on sublanes, N*H*W on lanes.
    x_flat = (jnp.transpose(x_nchw, (1, 0, 2, 3))
              .reshape(C, NHW).astype(jnp.float32))

    # Fold BatchNorm (eval / running-stats form) into one scale + one shift
    # per channel, packed as a single (C, 2) input.
    scale = gamma * lax.rsqrt(running_var + EPS)
    shift = beta - running_mean * scale
    bn = jnp.stack([scale, shift], axis=1).astype(jnp.float32)        # (C, 2)

    # Conv weight, tap-major: w_packed[k*G + g, c] = weight[g, c, dy, dx].
    w_packed = (jnp.transpose(weight, (2, 3, 0, 1))
                .reshape(9 * G, C).astype(jnp.float32))               # (9G, C)

    kernel = functools.partial(single_layer_kernel, H=H, W=W)

    out_flat = pl.pallas_call(
        kernel,
        out_shape=jax.ShapeDtypeStruct((C + G, NHW), jnp.float32),
        in_specs=[
            pl.BlockSpec(memory_space=pltpu.MemorySpace.VMEM),
            pl.BlockSpec(memory_space=pltpu.MemorySpace.VMEM),
            pl.BlockSpec(memory_space=pltpu.MemorySpace.VMEM),
        ],
        out_specs=pl.BlockSpec(memory_space=pltpu.MemorySpace.VMEM),
    )(x_flat, bn, w_packed)

    # (C+G, N*H*W) -> (N, C+G, H, W); pure layout plumbing outside the kernel.
    return jnp.transpose(out_flat.reshape(C + G, N, H, W), (1, 0, 2, 3))


def reference_forward(x_nchw, gamma, beta, running_mean, running_var, weight):
    """Plain-JAX reference matching PyTorch eval-mode semantics."""
    gm = gamma[None, :, None, None]
    bt = beta[None, :, None, None]
    mu = running_mean[None, :, None, None]
    var = running_var[None, :, None, None]
    a = jnp.maximum(gm * (x_nchw - mu) / jnp.sqrt(var + EPS) + bt, 0.0)
    conv = lax.conv_general_dilated(
        a, weight, window_strides=(1, 1), padding="SAME",
        dimension_numbers=("NCHW", "OIHW", "NCHW"))
    return jnp.concatenate([x_nchw, conv], axis=1)


if __name__ == "__main__":
    # Small DenseNet-layer shapes: batch=2, nChannels=4, growthRate=8, 16x16.
    N, C, H, W, G = 2, 4, 16, 16, 8

    key = jax.random.PRNGKey(0)
    kx, kg, kb, km, kv, kw = jax.random.split(key, 6)

    x = jax.random.normal(kx, (N, C, H, W), dtype=jnp.float32)
    gamma = 1.0 + 0.1 * jax.random.normal(kg, (C,), dtype=jnp.float32)
    beta = 0.1 * jax.random.normal(kb, (C,), dtype=jnp.float32)
    running_mean = 0.1 * jax.random.normal(km, (C,), dtype=jnp.float32)
    running_var = 1.0 + 0.1 * jax.random.uniform(kv, (C,), dtype=jnp.float32)
    # Kaiming-style normal init for the 3x3 conv weight (bias=False).
    fan_in = C * 3 * 3
    weight = jax.random.normal(kw, (G, C, 3, 3), dtype=jnp.float32) * (2.0 / fan_in) ** 0.5

    out = single_layer_forward(x, gamma, beta, running_mean, running_var, weight)
    out = jax.block_until_ready(out)

    ref = reference_forward(x, gamma, beta, running_mean, running_var, weight)
    assert out.shape == (N, C + G, H, W), out.shape
    # Passthrough (concat) channels are a straight copy -> essentially exact.
    assert jnp.allclose(out[:, :C], ref[:, :C], atol=1e-6, rtol=1e-6), \
        float(jnp.max(jnp.abs(out[:, :C] - ref[:, :C])))
    # Conv channels: f32 MXU operands (default MXU precision); tolerance kept
    # conservative though the observed error is typically far smaller.
    assert jnp.allclose(out[:, C:], ref[:, C:], atol=5e-2, rtol=5e-2), \
        float(jnp.max(jnp.abs(out[:, C:] - ref[:, C:])))

    print("KERNEL_OK")
</pallas_src>

<mosaic_0001>
module attributes {stable_mosaic.version = 11 : i64} {
  func.func @single_layer_kernel(%arg0: memref<4x512xf32, #tpu.memory_space<vmem>>, %arg1: memref<4x2xf32, #tpu.memory_space<vmem>>, %arg2: memref<72x4xf32, #tpu.memory_space<vmem>>, %arg3: memref<12x512xf32, #tpu.memory_space<vmem>>) attributes {dimension_semantics = [], scalar_prefetch = 0 : i64, scratch_operands = 0 : i64, tpu.core_type = #tpu.core_type<tc>} {
    %c0 = arith.constant 0 : index
    %c0_0 = arith.constant 0 : index
    %0 = vector.load %arg0[%c0, %c0_0] : memref<4x512xf32, #tpu.memory_space<vmem>>, vector<4x512xf32>
    %c0_1 = arith.constant 0 : index
    %c0_2 = arith.constant 0 : index
    %1 = vector.load %arg1[%c0_1, %c0_2] : memref<4x2xf32, #tpu.memory_space<vmem>>, vector<4x1xf32>
    %c0_3 = arith.constant 0 : index
    %c1 = arith.constant 1 : index
    %2 = vector.load %arg1[%c0_3, %c1] : memref<4x2xf32, #tpu.memory_space<vmem>>, vector<4x1xf32>
    %3 = vector.broadcast %1 : vector<4x1xf32> to vector<4x512xf32>
    %4 = arith.mulf %0, %3 : vector<4x512xf32>
    %5 = vector.broadcast %2 : vector<4x1xf32> to vector<4x512xf32>
    %6 = arith.addf %4, %5 : vector<4x512xf32>
    %cst = arith.constant 0.000000e+00 : f32
    %7 = vector.broadcast %cst : f32 to vector<4x512xf32>
    %8 = arith.maximumf %6, %7 : vector<4x512xf32>
    %9 = tpu.iota {dimensions = array<i32: 1>} : vector<1x512xi32>
    %c15_i32 = arith.constant 15 : i32
    %10 = vector.broadcast %c15_i32 : i32 to vector<1x512xi32>
    %11 = arith.andi %9, %10 : vector<1x512xi32>
    %c4_i32 = arith.constant 4 : i32
    %12 = vector.broadcast %c4_i32 : i32 to vector<1x512xi32>
    %13 = arith.shrsi %9, %12 : vector<1x512xi32>
    %c15_i32_4 = arith.constant 15 : i32
    %14 = vector.broadcast %c15_i32_4 : i32 to vector<1x512xi32>
    %15 = arith.andi %13, %14 : vector<1x512xi32>
    %cst_5 = arith.constant 0.000000e+00 : f32
    %16 = vector.broadcast %cst_5 : f32 to vector<8x512xf32>
    %c17_i32 = arith.constant 17 : i32
    %17 = tpu.dynamic_rotate %8 by %c17_i32 dim 1 : vector<4x512xf32>, i32 -> vector<4x512xf32>
    %c1_i32 = arith.constant 1 : i32
    %18 = vector.broadcast %c1_i32 : i32 to vector<1x512xi32>
    %19 = arith.cmpi sge, %15, %18 : vector<1x512xi32>
    %c1_i32_6 = arith.constant 1 : i32
    %20 = vector.broadcast %c1_i32_6 : i32 to vector<1x512xi32>
    %21 = arith.cmpi sge, %11, %20 : vector<1x512xi32>
    %22 = arith.andi %19, %21 : vector<1x512xi1>
    %cst_7 = arith.constant 0.000000e+00 : f32
    %23 = vector.shape_cast %22 : vector<1x512xi1> to vector<1x512xi1>
    %24 = vector.broadcast %23 : vector<1x512xi1> to vector<4x512xi1>
    %25 = vector.broadcast %cst_7 : f32 to vector<4x512xf32>
    %26 = arith.select %24, %17, %25 : vector<4x512xi1>, vector<4x512xf32>
    %c0_8 = arith.constant 0 : index
    %c0_9 = arith.constant 0 : index
    %27 = vector.load %arg2[%c0_8, %c0_9] : memref<72x4xf32, #tpu.memory_space<vmem>>, vector<8x4xf32>
    %cst_10 = arith.constant dense<0.000000e+00> : vector<8x512xf32>
    %28 = tpu.matmul %27, %26, %cst_10 {dimension_numbers = #tpu.dot_dimension_numbers<[1], [0], [0], [1], [0, 0, 1, 1], [], []>} : vector<8x4xf32>, vector<4x512xf32>, vector<8x512xf32> -> vector<8x512xf32>
    %29 = arith.addf %16, %28 : vector<8x512xf32>
    %c16_i32 = arith.constant 16 : i32
    %30 = tpu.dynamic_rotate %8 by %c16_i32 dim 1 : vector<4x512xf32>, i32 -> vector<4x512xf32>
    %c1_i32_11 = arith.constant 1 : i32
    %31 = vector.broadcast %c1_i32_11 : i32 to vector<1x512xi32>
    %32 = arith.cmpi sge, %15, %31 : vector<1x512xi32>
    %cst_12 = arith.constant 0.000000e+00 : f32
    %33 = vector.shape_cast %32 : vector<1x512xi1> to vector<1x512xi1>
    %34 = vector.broadcast %33 : vector<1x512xi1> to vector<4x512xi1>
    %35 = vector.broadcast %cst_12 : f32 to vector<4x512xf32>
    %36 = arith.select %34, %30, %35 : vector<4x512xi1>, vector<4x512xf32>
    %c8 = arith.constant 8 : index
    %c0_13 = arith.constant 0 : index
    %37 = vector.load %arg2[%c8, %c0_13] : memref<72x4xf32, #tpu.memory_space<vmem>>, vector<8x4xf32>
    %cst_14 = arith.constant dense<0.000000e+00> : vector<8x512xf32>
    %38 = tpu.matmul %37, %36, %cst_14 {dimension_numbers = #tpu.dot_dimension_numbers<[1], [0], [0], [1], [0, 0, 1, 1], [], []>} : vector<8x4xf32>, vector<4x512xf32>, vector<8x512xf32> -> vector<8x512xf32>
    %39 = arith.addf %29, %38 : vector<8x512xf32>
    %c15_i32_15 = arith.constant 15 : i32
    %40 = tpu.dynamic_rotate %8 by %c15_i32_15 dim 1 : vector<4x512xf32>, i32 -> vector<4x512xf32>
    %c1_i32_16 = arith.constant 1 : i32
    %41 = vector.broadcast %c1_i32_16 : i32 to vector<1x512xi32>
    %42 = arith.cmpi sge, %15, %41 : vector<1x512xi32>
    %c14_i32 = arith.constant 14 : i32
    %43 = vector.broadcast %c14_i32 : i32 to vector<1x512xi32>
    %44 = arith.cmpi sle, %11, %43 : vector<1x512xi32>
    %45 = arith.andi %42, %44 : vector<1x512xi1>
    %cst_17 = arith.constant 0.000000e+00 : f32
    %46 = vector.shape_cast %45 : vector<1x512xi1> to vector<1x512xi1>
    %47 = vector.broadcast %46 : vector<1x512xi1> to vector<4x512xi1>
    %48 = vector.broadcast %cst_17 : f32 to vector<4x512xf32>
    %49 = arith.select %47, %40, %48 : vector<4x512xi1>, vector<4x512xf32>
    %c16 = arith.constant 16 : index
    %c0_18 = arith.constant 0 : index
    %50 = vector.load %arg2[%c16, %c0_18] : memref<72x4xf32, #tpu.memory_space<vmem>>, vector<8x4xf32>
    %cst_19 = arith.constant dense<0.000000e+00> : vector<8x512xf32>
    %51 = tpu.matmul %50, %49, %cst_19 {dimension_numbers = #tpu.dot_dimension_numbers<[1], [0], [0], [1], [0, 0, 1, 1], [], []>} : vector<8x4xf32>, vector<4x512xf32>, vector<8x512xf32> -> vector<8x512xf32>
    %52 = arith.addf %39, %51 : vector<8x512xf32>
    %c1_i32_20 = arith.constant 1 : i32
    %53 = tpu.dynamic_rotate %8 by %c1_i32_20 dim 1 : vector<4x512xf32>, i32 -> vector<4x512xf32>
    %c1_i32_21 = arith.constant 1 : i32
    %54 = vector.broadcast %c1_i32_21 : i32 to vector<1x512xi32>
    %55 = arith.cmpi sge, %11, %54 : vector<1x512xi32>
    %cst_22 = arith.constant 0.000000e+00 : f32
    %56 = vector.shape_cast %55 : vector<1x512xi1> to vector<1x512xi1>
    %57 = vector.broadcast %56 : vector<1x512xi1> to vector<4x512xi1>
    %58 = vector.broadcast %cst_22 : f32 to vector<4x512xf32>
    %59 = arith.select %57, %53, %58 : vector<4x512xi1>, vector<4x512xf32>
    %c24 = arith.constant 24 : index
    %c0_23 = arith.constant 0 : index
    %60 = vector.load %arg2[%c24, %c0_23] : memref<72x4xf32, #tpu.memory_space<vmem>>, vector<8x4xf32>
    %cst_24 = arith.constant dense<0.000000e+00> : vector<8x512xf32>
    %61 = tpu.matmul %60, %59, %cst_24 {dimension_numbers = #tpu.dot_dimension_numbers<[1], [0], [0], [1], [0, 0, 1, 1], [], []>} : vector<8x4xf32>, vector<4x512xf32>, vector<8x512xf32> -> vector<8x512xf32>
    %62 = arith.addf %52, %61 : vector<8x512xf32>
    %c32 = arith.constant 32 : index
    %c0_25 = arith.constant 0 : index
    %63 = vector.load %arg2[%c32, %c0_25] : memref<72x4xf32, #tpu.memory_space<vmem>>, vector<8x4xf32>
    %cst_26 = arith.constant dense<0.000000e+00> : vector<8x512xf32>
    %64 = tpu.matmul %63, %8, %cst_26 {dimension_numbers = #tpu.dot_dimension_numbers<[1], [0], [0], [1], [0, 0, 1, 1], [], []>} : vector<8x4xf32>, vector<4x512xf32>, vector<8x512xf32> -> vector<8x512xf32>
    %65 = arith.addf %62, %64 : vector<8x512xf32>
    %c511_i32 = arith.constant 511 : i32
    %66 = tpu.dynamic_rotate %8 by %c511_i32 dim 1 : vector<4x512xf32>, i32 -> vector<4x512xf32>
    %c14_i32_27 = arith.constant 14 : i32
    %67 = vector.broadcast %c14_i32_27 : i32 to vector<1x512xi32>
    %68 = arith.cmpi sle, %11, %67 : vector<1x512xi32>
    %cst_28 = arith.constant 0.000000e+00 : f32
    %69 = vector.shape_cast %68 : vector<1x512xi1> to vector<1x512xi1>
    %70 = vector.broadcast %69 : vector<1x512xi1> to vector<4x512xi1>
    %71 = vector.broadcast %cst_28 : f32 to vector<4x512xf32>
    %72 = arith.select %70, %66, %71 : vector<4x512xi1>, vector<4x512xf32>
    %c40 = arith.constant 40 : index
    %c0_29 = arith.constant 0 : index
    %73 = vector.load %arg2[%c40, %c0_29] : memref<72x4xf32, #tpu.memory_space<vmem>>, vector<8x4xf32>
    %cst_30 = arith.constant dense<0.000000e+00> : vector<8x512xf32>
    %74 = tpu.matmul %73, %72, %cst_30 {dimension_numbers = #tpu.dot_dimension_numbers<[1], [0], [0], [1], [0, 0, 1, 1], [], []>} : vector<8x4xf32>, vector<4x512xf32>, vector<8x512xf32> -> vector<8x512xf32>
    %75 = arith.addf %65, %74 : vector<8x512xf32>
    %c497_i32 = arith.constant 497 : i32
    %76 = tpu.dynamic_rotate %8 by %c497_i32 dim 1 : vector<4x512xf32>, i32 -> vector<4x512xf32>
    %c14_i32_31 = arith.constant 14 : i32
    %77 = vector.broadcast %c14_i32_31 : i32 to vector<1x512xi32>
    %78 = arith.cmpi sle, %15, %77 : vector<1x512xi32>
    %c1_i32_32 = arith.constant 1 : i32
    %79 = vector.broadcast %c1_i32_32 : i32 to vector<1x512xi32>
    %80 = arith.cmpi sge, %11, %79 : vector<1x512xi32>
    %81 = arith.andi %78, %80 : vector<1x512xi1>
    %cst_33 = arith.constant 0.000000e+00 : f32
    %82 = vector.shape_cast %81 : vector<1x512xi1> to vector<1x512xi1>
    %83 = vector.broadcast %82 : vector<1x512xi1> to vector<4x512xi1>
    %84 = vector.broadcast %cst_33 : f32 to vector<4x512xf32>
    %85 = arith.select %83, %76, %84 : vector<4x512xi1>, vector<4x512xf32>
    %c48 = arith.constant 48 : index
    %c0_34 = arith.constant 0 : index
    %86 = vector.load %arg2[%c48, %c0_34] : memref<72x4xf32, #tpu.memory_space<vmem>>, vector<8x4xf32>
    %cst_35 = arith.constant dense<0.000000e+00> : vector<8x512xf32>
    %87 = tpu.matmul %86, %85, %cst_35 {dimension_numbers = #tpu.dot_dimension_numbers<[1], [0], [0], [1], [0, 0, 1, 1], [], []>} : vector<8x4xf32>, vector<4x512xf32>, vector<8x512xf32> -> vector<8x512xf32>
    %88 = arith.addf %75, %87 : vector<8x512xf32>
    %c496_i32 = arith.constant 496 : i32
    %89 = tpu.dynamic_rotate %8 by %c496_i32 dim 1 : vector<4x512xf32>, i32 -> vector<4x512xf32>
    %c14_i32_36 = arith.constant 14 : i32
    %90 = vector.broadcast %c14_i32_36 : i32 to vector<1x512xi32>
    %91 = arith.cmpi sle, %15, %90 : vector<1x512xi32>
    %cst_37 = arith.constant 0.000000e+00 : f32
    %92 = vector.shape_cast %91 : vector<1x512xi1> to vector<1x512xi1>
    %93 = vector.broadcast %92 : vector<1x512xi1> to vector<4x512xi1>
    %94 = vector.broadcast %cst_37 : f32 to vector<4x512xf32>
    %95 = arith.select %93, %89, %94 : vector<4x512xi1>, vector<4x512xf32>
    %c56 = arith.constant 56 : index
    %c0_38 = arith.constant 0 : index
    %96 = vector.load %arg2[%c56, %c0_38] : memref<72x4xf32, #tpu.memory_space<vmem>>, vector<8x4xf32>
    %cst_39 = arith.constant dense<0.000000e+00> : vector<8x512xf32>
    %97 = tpu.matmul %96, %95, %cst_39 {dimension_numbers = #tpu.dot_dimension_numbers<[1], [0], [0], [1], [0, 0, 1, 1], [], []>} : vector<8x4xf32>, vector<4x512xf32>, vector<8x512xf32> -> vector<8x512xf32>
    %98 = arith.addf %88, %97 : vector<8x512xf32>
    %c495_i32 = arith.constant 495 : i32
    %99 = tpu.dynamic_rotate %8 by %c495_i32 dim 1 : vector<4x512xf32>, i32 -> vector<4x512xf32>
    %c14_i32_40 = arith.constant 14 : i32
    %100 = vector.broadcast %c14_i32_40 : i32 to vector<1x512xi32>
    %101 = arith.cmpi sle, %15, %100 : vector<1x512xi32>
    %c14_i32_41 = arith.constant 14 : i32
    %102 = vector.broadcast %c14_i32_41 : i32 to vector<1x512xi32>
    %103 = arith.cmpi sle, %11, %102 : vector<1x512xi32>
    %104 = arith.andi %101, %103 : vector<1x512xi1>
    %cst_42 = arith.constant 0.000000e+00 : f32
    %105 = vector.shape_cast %104 : vector<1x512xi1> to vector<1x512xi1>
    %106 = vector.broadcast %105 : vector<1x512xi1> to vector<4x512xi1>
    %107 = vector.broadcast %cst_42 : f32 to vector<4x512xf32>
    %108 = arith.select %106, %99, %107 : vector<4x512xi1>, vector<4x512xf32>
    %c64 = arith.constant 64 : index
    %c0_43 = arith.constant 0 : index
    %109 = vector.load %arg2[%c64, %c0_43] : memref<72x4xf32, #tpu.memory_space<vmem>>, vector<8x4xf32>
    %cst_44 = arith.constant dense<0.000000e+00> : vector<8x512xf32>
    %110 = tpu.matmul %109, %108, %cst_44 {dimension_numbers = #tpu.dot_dimension_numbers<[1], [0], [0], [1], [0, 0, 1, 1], [], []>} : vector<8x4xf32>, vector<4x512xf32>, vector<8x512xf32> -> vector<8x512xf32>
    %111 = arith.addf %98, %110 : vector<8x512xf32>
    %c0_45 = arith.constant 0 : index
    %c0_46 = arith.constant 0 : index
    %112 = vector.load %arg3[%c0_45, %c0_46] : memref<12x512xf32, #tpu.memory_space<vmem>>, vector<4x512xf32>
    tpu.vector_store %arg3[%c0_45, %c0_46], %0 {strides = array<i32>} : memref<12x512xf32, #tpu.memory_space<vmem>>, vector<4x512xf32>,
    %c4 = arith.constant 4 : index
    %c0_47 = arith.constant 0 : index
    %113 = vector.load %arg3[%c4, %c0_47] : memref<12x512xf32, #tpu.memory_space<vmem>>, vector<8x512xf32>
    tpu.vector_store %arg3[%c4, %c0_47], %111 {strides = array<i32>} : memref<12x512xf32, #tpu.memory_space<vmem>>, vector<8x512xf32>,
    return
  }
}

</mosaic_0001>

<llo_original>
// kernel: single_layer_forward.1
$region0: #{single_layer_forward.1}
  #allocation0 [shape = 'u32[]', space=smem, size = 0x4, offset = 0x4, fixed_abs, tag = 'smem constant byte address 0x4 - core index']
  #allocation1 [shape = 'u32[144,128]{1,0:T(1,128)}', space=vmem, size = 0x12000, scoped, tag = 'internal scratch']
  %s0 = inlined_call_operand.vmem [shape: f32[4,512], index: 0, kind: input, shape index: {}]
  %s1 = inlined_call_operand.vmem [shape: f32[4,2], index: 1, kind: input, shape index: {}]
  %s2 = inlined_call_operand.vmem [shape: f32[72,4], index: 2, kind: input, shape index: {}]
  %s3 = inlined_call_operand.vmem [shape: f32[12,512], index: 3, kind: output, shape index: {}]
  %s4 = sld [smem:[#allocation0]]
  $region22: #{single_layer_forward.1} parent=0
    _
  %s6 = ssub.s32 1, %s4
  %s7 = scalar_select 0, %s6, %s4
  // Predicated region
  $region2: #{single_layer_forward.1} parent=0 // pred_check
    _
  $region3: #{single_layer_forward.1} parent=0 // pred_check_branch
    %9 = sbr.rel (0) target = $region5
  $region4: #{single_layer_forward.1} parent=0 // pred_region
    _
  $region5: #{single_layer_forward.1} parent=0 // pred_fallthru
    _
  // Predicated region
  $region6: #{single_layer_forward.1} parent=0 // pred_check
    _
  $region7: #{single_layer_forward.1} parent=0 // pred_check_branch
    %11 = sbr.rel (0) target = $region9
  $region8: #{single_layer_forward.1} parent=0 // pred_region
    _
  $region9: #{single_layer_forward.1} parent=0 // pred_fallthru
    _
  // Predicated region
  $region10: #{single_layer_forward.1} parent=0 // pred_check
    _
  $region11: #{single_layer_forward.1} parent=0 // pred_check_branch
    %13 = sbr.rel (0) target = $region13
  $region12: #{single_layer_forward.1} parent=0 // pred_region
    _
  $region13: #{single_layer_forward.1} parent=0 // pred_fallthru
    _
  %v14 = vld [vmem:[%s0] sm:$0xff]
  %v15 = vld [vmem:[%s0 + $0x8] sm:$0xff]
  %v16 = vld [vmem:[%s1] sm:$0xf]
  %18 = vset.pattern.permute.xlu0 0
  %19 = vperm.xlu0 %18, %v16
  %v20 = vpop.permute.xlu0 %19
  %v22 = vunpack.c.l.s4 839922192
  %v23 = vunpack.c.0.s8 %v22
  %v24 = vlaneseq
  %v25 = vshrl.u32 %v24, 7
  %v26 = vsub.s32 %v23, %v25
  %v27 = vrot.slane %v20, %v26
  %v29 = vmul.f32 %v14, %v27
  %v30 = vmul.f32 %v15, %v27
  %31 = vset.pattern.permute.xlu0 1
  %32 = vperm.xlu0 %31, %v16
  %v33 = vpop.permute.xlu0 %32
  %v35 = vunpack.c.l.s4 839922192
  %v36 = vunpack.c.0.s8 %v35
  %v37 = vlaneseq
  %v38 = vshrl.u32 %v37, 7
  %v39 = vsub.s32 %v36, %v38
  %v40 = vrot.slane %v33, %v39
  %v42 = vadd.f32 %v29, %v40
  %v43 = vadd.f32 %v30, %v40
  %v44 = vmax.f32 %v42, 0.0
  %v45 = vmax.f32 %v43, 0.0
  %v46 = vlaneseq
  %v47 = vand.u32 %v46, 127
  %v48 = vadd.s32 %v47, 128
  %v49 = vadd.s32 %v47, 256
  %v50 = vadd.s32 %v47, 384
  %v51 = vand.u32 %v47, 15
  %v52 = vand.u32 %v48, 15
  %v53 = vand.u32 %v49, 15
  %v54 = vand.u32 %v50, 15
  %v55 = vshra.s32 %v47, 4
  %v56 = vshra.s32 %v48, 4
  %v57 = vshra.s32 %v49, 4
  %v58 = vshra.s32 %v50, 4
  %v59 = vand.u32 %v55, 15
  %v60 = vand.u32 %v56, 15
  %v61 = vand.u32 %v57, 15
  %v62 = vand.u32 %v58, 15
  %v65 = vcombine.high %v44, %v44
  %v66 = vcombine.high %v45, %v45
  %69 = vrot.lane.b32.xlu0 %v44, 17
  %v70 = vpop.permute.xlu0 %69
  %71 = vrot.lane.b32.xlu0 %v65, 17
  %v72 = vpop.permute.xlu0 %71
  %73 = vrot.lane.b32.xlu0 %v45, 17
  %v74 = vpop.permute.xlu0 %73
  %75 = vrot.lane.b32.xlu0 %v66, 17
  %v76 = vpop.permute.xlu0 %75
  %vm77 = vcmp.lt.s32.totalorder %v47, 17
  %v78 = vsel %vm77, %v74, %v76
  %v79 = vsel %vm77, %v72, %v74
  %v80 = vsel %vm77, %v70, %v72
  %v81 = vsel %vm77, %v76, %v70
  %vm82 = vcmp.ge.s32.totalorder %v59, 1
  %vm83 = vcmp.ge.s32.totalorder %v60, 1
  %vm84 = vcmp.ge.s32.totalorder %v61, 1
  %vm85 = vcmp.ge.s32.totalorder %v62, 1
  %vm86 = vcmp.ge.s32.totalorder %v51, 1
  %vm87 = vcmp.ge.s32.totalorder %v52, 1
  %vm88 = vcmp.ge.s32.totalorder %v53, 1
  %vm89 = vcmp.ge.s32.totalorder %v54, 1
  %vm90 = vmand %vm82, %vm86
  %vm91 = vmand %vm83, %vm87
  %vm92 = vmand %vm84, %vm88
  %vm93 = vmand %vm85, %vm89
  %v94 = vsel %vm90, 1, 0
  %v95 = vsel %vm91, 1, 0
  %v96 = vsel %vm92, 1, 0
  %v97 = vsel %vm93, 1, 0
  %vm98 = vcmp.eq.s32.totalorder %v94, 1
  %vm99 = vcmp.eq.s32.totalorder %v95, 1
  %vm100 = vcmp.eq.s32.totalorder %v96, 1
  %vm101 = vcmp.eq.s32.totalorder %v97, 1
  %v102 = vsel %vm98, %v81, 0.0
  %v103 = vsel %vm99, %v80, 0.0
  %v104 = vsel %vm100, %v79, 0.0
  %v105 = vsel %vm101, %v78, 0.0
  %v106 = vld [vmem:[%s2] sm:$0xff]
  %107 = vrot.lane.b32.xlu0 %v44, 16
  %v108 = vpop.permute.xlu0 %107
  %109 = vrot.lane.b32.xlu0 %v65, 16
  %v110 = vpop.permute.xlu0 %109
  %111 = vrot.lane.b32.xlu0 %v45, 16
  %v112 = vpop.permute.xlu0 %111
  %113 = vrot.lane.b32.xlu0 %v66, 16
  %v114 = vpop.permute.xlu0 %113
  %vm115 = vcmp.lt.s32.totalorder %v47, 16
  %v116 = vsel %vm115, %v112, %v114
  %v117 = vsel %vm115, %v110, %v112
  %v118 = vsel %vm115, %v108, %v110
  %v119 = vsel %vm115, %v114, %v108
  %v120 = vsel %vm82, 1, 0
  %v121 = vsel %vm83, 1, 0
  %v122 = vsel %vm84, 1, 0
  %v123 = vsel %vm85, 1, 0
  %vm124 = vcmp.eq.s32.totalorder %v120, 1
  %vm125 = vcmp.eq.s32.totalorder %v121, 1
  %vm126 = vcmp.eq.s32.totalorder %v122, 1
  %vm127 = vcmp.eq.s32.totalorder %v123, 1
  %v128 = vsel %vm124, %v119, 0.0
  %v129 = vsel %vm125, %v118, 0.0
  %v130 = vsel %vm126, %v117, 0.0
  %v131 = vsel %vm127, %v116, 0.0
  %v132 = vld [vmem:[%s2 + $0x8] sm:$0xff]
  %vm133 = vcmask 31744
  %v135 = vsel %vm133, %v132, 0
  %vm137 = vcmask 1043456
  %v139 = vsel %vm137, %v128, 0
  %v142 = vsel %vm137, %v129, 0
  %v145 = vsel %vm137, %v130, 0
  %v148 = vsel %vm137, %v131, 0
  %150 = vmatprep.subr.mxu0 %v142
  %151 = vmatpush1.msra.mxu0 %v139
  %152 = vmatprep.subr.mxu0 0.0
  %153 = vmatpush1.msra.mxu0 0.0
  %154 = vmatprep.subr.mxu0 0.0
  %155 = vmatpush1.msra.mxu0 0.0
  %156 = vmatprep.subr.mxu0 0.0
  %157 = vmatpush1.msra.mxu0 0.0
  %158 = vmatprep.subr.mxu0 0.0
  %159 = vmatpush1.msra.mxu0 0.0
  %160 = vmatprep.subr.mxu0 0.0
  %161 = vmatpush1.msra.mxu0 0.0
  %162 = vmatprep.subr.mxu0 0.0
  %163 = vmatpush1.msra.mxu0 0.0
  %164 = vmatprep.subr.mxu0 0.0
  %165 = vmatpush1.msra.mxu0 0.0
  %166 = vmatprep.subr.mxu0 0.0
  %167 = vmatpush1.msra.mxu0 0.0
  %168 = vmatprep.subr.mxu0 0.0
  %169 = vmatpush1.msra.mxu0 0.0
  %170 = vmatprep.subr.mxu0 0.0
  %171 = vmatpush1.msra.mxu0 0.0
  %172 = vmatprep.subr.mxu0 0.0
  %173 = vmatpush1.msra.mxu0 0.0
  %174 = vmatprep.subr.mxu0 0.0
  %175 = vmatpush1.msra.mxu0 0.0
  %176 = vmatprep.subr.mxu0 0.0
  %177 = vmatpush1.msra.mxu0 0.0
  %178 = vmatprep.subr.mxu0 0.0
  %179 = vmatpush1.msra.mxu0 0.0
  %180 = vmatprep.subr.mxu0 0.0
  %181 = vmatpush1.msra.mxu0 0.0
  %182 = vmatprep.subr.mxu0 0.0
  %183 = vmatpush1.msra.mxu0 0.0
  %184 = vmatprep.subr.mxu0 0.0
  %185 = vmatpush1.msra.mxu0 0.0
  %186 = vmatprep.subr.mxu0 0.0
  %187 = vmatpush1.msra.mxu0 0.0
  %188 = vmatprep.subr.mxu0 0.0
  %189 = vmatpush1.msra.mxu0 0.0
  %190 = vmatprep.subr.mxu0 0.0
  %191 = vmatpush1.msra.mxu0 0.0
  %192 = vmatprep.subr.mxu0 0.0
  %193 = vmatpush1.msra.mxu0 0.0
  %194 = vmatprep.subr.mxu0 0.0
  %195 = vmatpush1.msra.mxu0 0.0
  %196 = vmatprep.subr.mxu0 0.0
  %197 = vmatpush1.msra.mxu0 0.0
  %198 = vmatprep.subr.mxu0 0.0
  %199 = vmatpush1.msra.mxu0 0.0
  %200 = vmatprep.subr.mxu0 0.0
  %201 = vmatpush1.msra.mxu0 0.0
  %202 = vmatprep.subr.mxu0 0.0
  %203 = vmatpush1.msra.mxu0 0.0
  %204 = vmatprep.subr.mxu0 0.0
  %205 = vmatpush1.msra.mxu0 0.0
  %206 = vmatprep.subr.mxu0 0.0
  %207 = vmatpush1.msra.mxu0 0.0
  %208 = vmatprep.subr.mxu0 0.0
  %209 = vmatpush1.msra.mxu0 0.0
  %210 = vmatprep.subr.mxu0 0.0
  %211 = vmatpush1.msra.mxu0 0.0
  %212 = vmatprep.subr.mxu0 0.0
  %213 = vmatpush1.msra.mxu0 0.0
  %214 = vmatprep.mubr.f32.mxu0 0.0
  %215 = vmatmul.mubr.f32.gmra.mrb[0].mxu0 %v135
  %v216 = vpop.f32.mrb[0].mxu0
  %v217 = vadd.f32 0.0, %v216
  %v218 = vpop.f32.mrb[0].mxu0
  %v219 = vadd.f32 0.0, %v218
  %220 = vdwg.mxu0
  %221 = vmatprep.subr.mxu0 %v148
  %222 = vmatpush1.msra.mxu0 %v145
  %223 = vmatprep.subr.mxu0 0.0
  %224 = vmatpush1.msra.mxu0 0.0
  %225 = vmatprep.subr.mxu0 0.0
  %226 = vmatpush1.msra.mxu0 0.0
  %227 = vmatprep.subr.mxu0 0.0
  %228 = vmatpush1.msra.mxu0 0.0
  %229 = vmatprep.subr.mxu0 0.0
  %230 = vmatpush1.msra.mxu0 0.0
  %231 = vmatprep.subr.mxu0 0.0
  %232 = vmatpush1.msra.mxu0 0.0
  %233 = vmatprep.subr.mxu0 0.0
  %234 = vmatpush1.msra.mxu0 0.0
  %235 = vmatprep.subr.mxu0 0.0
  %236 = vmatpush1.msra.mxu0 0.0
  %237 = vmatprep.subr.mxu0 0.0
  %238 = vmatpush1.msra.mxu0 0.0
  %239 = vmatprep.subr.mxu0 0.0
  %240 = vmatpush1.msra.mxu0 0.0
  %241 = vmatprep.subr.mxu0 0.0
  %242 = vmatpush1.msra.mxu0 0.0
  %243 = vmatprep.subr.mxu0 0.0
  %244 = vmatpush1.msra.mxu0 0.0
  %245 = vmatprep.subr.mxu0 0.0
  %246 = vmatpush1.msra.mxu0 0.0
  %247 = vmatprep.subr.mxu0 0.0
  %248 = vmatpush1.msra.mxu0 0.0
  %249 = vmatprep.subr.mxu0 0.0
  %250 = vmatpush1.msra.mxu0 0.0
  %251 = vmatprep.subr.mxu0 0.0
  %252 = vmatpush1.msra.mxu0 0.0
  %253 = vmatprep.subr.mxu0 0.0
  %254 = vmatpush1.msra.mxu0 0.0
  %255 = vmatprep.subr.mxu0 0.0
  %256 = vmatpush1.msra.mxu0 0.0
  %257 = vmatprep.subr.mxu0 0.0
  %258 = vmatpush1.msra.mxu0 0.0
  %259 = vmatprep.subr.mxu0 0.0
  %260 = vmatpush1.msra.mxu0 0.0
  %261 = vmatprep.subr.mxu0 0.0
  %262 = vmatpush1.msra.mxu0 0.0
  %263 = vmatprep.subr.mxu0 0.0
  %264 = vmatpush1.msra.mxu0 0.0
  %265 = vmatprep.subr.mxu0 0.0
  %266 = vmatpush1.msra.mxu0 0.0
  %267 = vmatprep.subr.mxu0 0.0
  %268 = vmatpush1.msra.mxu0 0.0
  %269 = vmatprep.subr.mxu0 0.0
  %270 = vmatpush1.msra.mxu0 0.0
  %271 = vmatprep.subr.mxu0 0.0
  %272 = vmatpush1.msra.mxu0 0.0
  %273 = vmatprep.subr.mxu0 0.0
  %274 = vmatpush1.msra.mxu0 0.0
  %275 = vmatprep.subr.mxu0 0.0
  %276 = vmatpush1.msra.mxu0 0.0
  %277 = vmatprep.subr.mxu0 0.0
  %278 = vmatpush1.msra.mxu0 0.0
  %279 = vmatprep.subr.mxu0 0.0
  %280 = vmatpush1.msra.mxu0 0.0
  %281 = vmatprep.subr.mxu0 0.0
  %282 = vmatpush1.msra.mxu0 0.0
  %283 = vmatprep.subr.mxu0 0.0
  %284 = vmatpush1.msra.mxu0 0.0
  %285 = vmatprep.mubr.f32.mxu0 0.0
  %286 = vmatmul.mubr.f32.gmra.mrb[0].mxu0 %v135
  %v287 = vpop.f32.mrb[0].mxu0
  %v288 = vadd.f32 0.0, %v287
  %v289 = vpop.f32.mrb[0].mxu0
  %v290 = vadd.f32 0.0, %v289
  %291 = vdwg.mxu0
  %v293 = vsel %vm133, %v106, 0
  %v296 = vsel %vm137, %v102, 0
  %v299 = vsel %vm137, %v103, 0
  %v302 = vsel %vm137, %v104, 0
  %v305 = vsel %vm137, %v105, 0
  %307 = vmatprep.subr.mxu0 %v299
  %308 = vmatpush1.msra.mxu0 %v296
  %309 = vmatprep.subr.mxu0 0.0
  %310 = vmatpush1.msra.mxu0 0.0
  %311 = vmatprep.subr.mxu0 0.0
  %312 = vmatpush1.msra.mxu0 0.0
  %313 = vmatprep.subr.mxu0 0.0
  %314 = vmatpush1.msra.mxu0 0.0
  %315 = vmatprep.subr.mxu0 0.0
  %316 = vmatpush1.msra.mxu0 0.0
  %317 = vmatprep.subr.mxu0 0.0
  %318 = vmatpush1.msra.mxu0 0.0
  %319 = vmatprep.subr.mxu0 0.0
  %320 = vmatpush1.msra.mxu0 0.0
  %321 = vmatprep.subr.mxu0 0.0
  %322 = vmatpush1.msra.mxu0 0.0
  %323 = vmatprep.subr.mxu0 0.0
  %324 = vmatpush1.msra.mxu0 0.0
  %325 = vmatprep.subr.mxu0 0.0
  %326 = vmatpush1.msra.mxu0 0.0
  %327 = vmatprep.subr.mxu0 0.0
  %328 = vmatpush1.msra.mxu0 0.0
  %329 = vmatprep.subr.mxu0 0.0
  %330 = vmatpush1.msra.mxu0 0.0
  %331 = vmatprep.subr.mxu0 0.0
  %332 = vmatpush1.msra.mxu0 0.0
  %333 = vmatprep.subr.mxu0 0.0
  %334 = vmatpush1.msra.mxu0 0.0
  %335 = vmatprep.subr.mxu0 0.0
  %336 = vmatpush1.msra.mxu0 0.0
  %337 = vmatprep.subr.mxu0 0.0
  %338 = vmatpush1.msra.mxu0 0.0
  %339 = vmatprep.subr.mxu0 0.0
  %340 = vmatpush1.msra.mxu0 0.0
  %341 = vmatprep.subr.mxu0 0.0
  %342 = vmatpush1.msra.mxu0 0.0
  %343 = vmatprep.subr.mxu0 0.0
  %344 = vmatpush1.msra.mxu0 0.0
  %345 = vmatprep.subr.mxu0 0.0
  %346 = vmatpush1.msra.mxu0 0.0
  %347 = vmatprep.subr.mxu0 0.0
  %348 = vmatpush1.msra.mxu0 0.0
  %349 = vmatprep.subr.mxu0 0.0
  %350 = vmatpush1.msra.mxu0 0.0
  %351 = vmatprep.subr.mxu0 0.0
  %352 = vmatpush1.msra.mxu0 0.0
  %353 = vmatprep.subr.mxu0 0.0
  %354 = vmatpush1.msra.mxu0 0.0
  %355 = vmatprep.subr.mxu0 0.0
  %356 = vmatpush1.msra.mxu0 0.0
  %357 = vmatprep.subr.mxu0 0.0
  %358 = vmatpush1.msra.mxu0 0.0
  %359 = vmatprep.subr.mxu0 0.0
  %360 = vmatpush1.msra.mxu0 0.0
  %361 = vmatprep.subr.mxu0 0.0
  %362 = vmatpush1.msra.mxu0 0.0
  %363 = vmatprep.subr.mxu0 0.0
  %364 = vmatpush1.msra.mxu0 0.0
  %365 = vmatprep.subr.mxu0 0.0
  %366 = vmatpush1.msra.mxu0 0.0
  %367 = vmatprep.subr.mxu0 0.0
  %368 = vmatpush1.msra.mxu0 0.0
  %369 = vmatprep.subr.mxu0 0.0
  %370 = vmatpush1.msra.mxu0 0.0
  %371 = vmatprep.mubr.f32.mxu0 0.0
  %372 = vmatmul.mubr.f32.gmra.mrb[0].mxu0 %v293
  %v373 = vpop.f32.mrb[0].mxu0
  %v374 = vadd.f32 %v217, %v373
  %v375 = vpop.f32.mrb[0].mxu0
  %v376 = vadd.f32 %v219, %v375
  %377 = vdwg.mxu0
  %378 = vmatprep.subr.mxu0 %v305
  %379 = vmatpush1.msra.mxu0 %v302
  %380 = vmatprep.subr.mxu0 0.0
  %381 = vmatpush1.msra.mxu0 0.0
  %382 = vmatprep.subr.mxu0 0.0
  %383 = vmatpush1.msra.mxu0 0.0
  %384 = vmatprep.subr.mxu0 0.0
  %385 = vmatpush1.msra.mxu0 0.0
  %386 = vmatprep.subr.mxu0 0.0
  %387 = vmatpush1.msra.mxu0 0.0
  %388 = vmatprep.subr.mxu0 0.0
  %389 = vmatpush1.msra.mxu0 0.0
  %390 = vmatprep.subr.mxu0 0.0
  %391 = vmatpush1.msra.mxu0 0.0
  %392 = vmatprep.subr.mxu0 0.0
  %393 = vmatpush1.msra.mxu0 0.0
  %394 = vmatprep.subr.mxu0 0.0
  %395 = vmatpush1.msra.mxu0 0.0
  %396 = vmatprep.subr.mxu0 0.0
  %397 = vmatpush1.msra.mxu0 0.0
  %398 = vmatprep.subr.mxu0 0.0
  %399 = vmatpush1.msra.mxu0 0.0
  %400 = vmatprep.subr.mxu0 0.0
  %401 = vmatpush1.msra.mxu0 0.0
  %402 = vmatprep.subr.mxu0 0.0
  %403 = vmatpush1.msra.mxu0 0.0
  %404 = vmatprep.subr.mxu0 0.0
  %405 = vmatpush1.msra.mxu0 0.0
  %406 = vmatprep.subr.mxu0 0.0
  %407 = vmatpush1.msra.mxu0 0.0
  %408 = vmatprep.subr.mxu0 0.0
  %409 = vmatpush1.msra.mxu0 0.0
  %410 = vmatprep.subr.mxu0 0.0
  %411 = vmatpush1.msra.mxu0 0.0
  %412 = vmatprep.subr.mxu0 0.0
  %413 = vmatpush1.msra.mxu0 0.0
  %414 = vmatprep.subr.mxu0 0.0
  %415 = vmatpush1.msra.mxu0 0.0
  %416 = vmatprep.subr.mxu0 0.0
  %417 = vmatpush1.msra.mxu0 0.0
  %418 = vmatprep.subr.mxu0 0.0
  %419 = vmatpush1.msra.mxu0 0.0
  %420 = vmatprep.subr.mxu0 0.0
  %421 = vmatpush1.msra.mxu0 0.0
  %422 = vmatprep.subr.mxu0 0.0
  %423 = vmatpush1.msra.mxu0 0.0
  %424 = vmatprep.subr.mxu0 0.0
  %425 = vmatpush1.msra.mxu0 0.0
  %426 = vmatprep.subr.mxu0 0.0
  %427 = vmatpush1.msra.mxu0 0.0
  %428 = vmatprep.subr.mxu0 0.0
  %429 = vmatpush1.msra.mxu0 0.0
  %430 = vmatprep.subr.mxu0 0.0
  %431 = vmatpush1.msra.mxu0 0.0
  %432 = vmatprep.subr.mxu0 0.0
  %433 = vmatpush1.msra.mxu0 0.0
  %434 = vmatprep.subr.mxu0 0.0
  %435 = vmatpush1.msra.mxu0 0.0
  %436 = vmatprep.subr.mxu0 0.0
  %437 = vmatpush1.msra.mxu0 0.0
  %438 = vmatprep.subr.mxu0 0.0
  %439 = vmatpush1.msra.mxu0 0.0
  %440 = vmatprep.subr.mxu0 0.0
  %441 = vmatpush1.msra.mxu0 0.0
  %442 = vmatprep.mubr.f32.mxu0 0.0
  %443 = vmatmul.mubr.f32.gmra.mrb[0].mxu0 %v293
  %v444 = vpop.f32.mrb[0].mxu0
  %v445 = vadd.f32 %v288, %v444
  %v446 = vpop.f32.mrb[0].mxu0
  %v447 = vadd.f32 %v290, %v446
  %448 = vdwg.mxu0
  %449 = vrot.lane.b32.xlu0 %v44, 15
  %v450 = vpop.permute.xlu0 %449
  %451 = vrot.lane.b32.xlu0 %v65, 15
  %v452 = vpop.permute.xlu0 %451
  %453 = vrot.lane.b32.xlu0 %v45, 15
  %v454 = vpop.permute.xlu0 %453
  %455 = vrot.lane.b32.xlu0 %v66, 15
  %v456 = vpop.permute.xlu0 %455
  %vm457 = vcmp.lt.s32.totalorder %v47, 15
  %v458 = vsel %vm457, %v454, %v456
  %v459 = vsel %vm457, %v452, %v454
  %v460 = vsel %vm457, %v450, %v452
  %v461 = vsel %vm457, %v456, %v450
  %vm462 = vcmp.le.s32.totalorder %v51, 14
  %vm463 = vcmp.le.s32.totalorder %v52, 14
  %vm464 = vcmp.le.s32.totalorder %v53, 14
  %vm465 = vcmp.le.s32.totalorder %v54, 14
  %vm466 = vmand %vm82, %vm462
  %vm467 = vmand %vm83, %vm463
  %vm468 = vmand %vm84, %vm464
  %vm469 = vmand %vm85, %vm465
  %v470 = vsel %vm466, 1, 0
  %v471 = vsel %vm467, 1, 0
  %v472 = vsel %vm468, 1, 0
  %v473 = vsel %vm469, 1, 0
  %vm474 = vcmp.eq.s32.totalorder %v470, 1
  %vm475 = vcmp.eq.s32.totalorder %v471, 1
  %vm476 = vcmp.eq.s32.totalorder %v472, 1
  %vm477 = vcmp.eq.s32.totalorder %v473, 1
  %v478 = vsel %vm474, %v461, 0.0
  %v479 = vsel %vm475, %v460, 0.0
  %v480 = vsel %vm476, %v459, 0.0
  %v481 = vsel %vm477, %v458, 0.0
  %v482 = vld [vmem:[%s2 + $0x10] sm:$0xff]
  %v484 = vsel %vm133, %v482, 0
  %v487 = vsel %vm137, %v478, 0
  %v490 = vsel %vm137, %v479, 0
  %v493 = vsel %vm137, %v480, 0
  %v496 = vsel %vm137, %v481, 0
  %498 = vmatprep.subr.mxu0 %v490
  %499 = vmatpush1.msra.mxu0 %v487
  %500 = vmatprep.subr.mxu0 0.0
  %501 = vmatpush1.msra.mxu0 0.0
  %502 = vmatprep.subr.mxu0 0.0
  %503 = vmatpush1.msra.mxu0 0.0
  %504 = vmatprep.subr.mxu0 0.0
  %505 = vmatpush1.msra.mxu0 0.0
  %506 = vmatprep.subr.mxu0 0.0
  %507 = vmatpush1.msra.mxu0 0.0
  %508 = vmatprep.subr.mxu0 0.0
  %509 = vmatpush1.msra.mxu0 0.0
  %510 = vmatprep.subr.mxu0 0.0
  %511 = vmatpush1.msra.mxu0 0.0
  %512 = vmatprep.subr.mxu0 0.0
  %513 = vmatpush1.msra.mxu0 0.0
  %514 = vmatprep.subr.mxu0 0.0
  %515 = vmatpush1.msra.mxu0 0.0
  %516 = vmatprep.subr.mxu0 0.0
  %517 = vmatpush1.msra.mxu0 0.0
  %518 = vmatprep.subr.mxu0 0.0
  %519 = vmatpush1.msra.mxu0 0.0
  %520 = vmatprep.subr.mxu0 0.0
  %521 = vmatpush1.msra.mxu0 0.0
  %522 = vmatprep.subr.mxu0 0.0
  %523 = vmatpush1.msra.mxu0 0.0
  %524 = vmatprep.subr.mxu0 0.0
  %525 = vmatpush1.msra.mxu0 0.0
  %526 = vmatprep.subr.mxu0 0.0
  %527 = vmatpush1.msra.mxu0 0.0
  %528 = vmatprep.subr.mxu0 0.0
  %529 = vmatpush1.msra.mxu0 0.0
  %530 = vmatprep.subr.mxu0 0.0
  %531 = vmatpush1.msra.mxu0 0.0
  %532 = vmatprep.subr.mxu0 0.0
  %533 = vmatpush1.msra.mxu0 0.0
  %534 = vmatprep.subr.mxu0 0.0
  %535 = vmatpush1.msra.mxu0 0.0
  %536 = vmatprep.subr.mxu0 0.0
  %537 = vmatpush1.msra.mxu0 0.0
  %538 = vmatprep.subr.mxu0 0.0
  %539 = vmatpush1.msra.mxu0 0.0
  %540 = vmatprep.subr.mxu0 0.0
  %541 = vmatpush1.msra.mxu0 0.0
  %542 = vmatprep.subr.mxu0 0.0
  %543 = vmatpush1.msra.mxu0 0.0
  %544 = vmatprep.subr.mxu0 0.0
  %545 = vmatpush1.msra.mxu0 0.0
  %546 = vmatprep.subr.mxu0 0.0
  %547 = vmatpush1.msra.mxu0 0.0
  %548 = vmatprep.subr.mxu0 0.0
  %549 = vmatpush1.msra.mxu0 0.0
  %550 = vmatprep.subr.mxu0 0.0
  %551 = vmatpush1.msra.mxu0 0.0
  %552 = vmatprep.subr.mxu0 0.0
  %553 = vmatpush1.msra.mxu0 0.0
  %554 = vmatprep.subr.mxu0 0.0
  %555 = vmatpush1.msra.mxu0 0.0
  %556 = vmatprep.subr.mxu0 0.0
  %557 = vmatpush1.msra.mxu0 0.0
  %558 = vmatprep.subr.mxu0 0.0
  %559 = vmatpush1.msra.mxu0 0.0
  %560 = vmatprep.subr.mxu0 0.0
  %561 = vmatpush1.msra.mxu0 0.0
  %562 = vmatprep.mubr.f32.mxu0 0.0
  %563 = vmatmul.mubr.f32.gmra.mrb[0].mxu0 %v484
  %v564 = vpop.f32.mrb[0].mxu0
  %v565 = vadd.f32 0.0, %v564
  %v566 = vpop.f32.mrb[0].mxu0
  %v567 = vadd.f32 0.0, %v566
  %568 = vdwg.mxu0
  %569 = vmatprep.subr.mxu0 %v496
  %570 = vmatpush1.msra.mxu0 %v493
  %571 = vmatprep.subr.mxu0 0.0
  %572 = vmatpush1.msra.mxu0 0.0
  %573 = vmatprep.subr.mxu0 0.0
  %574 = vmatpush1.msra.mxu0 0.0
  %575 = vmatprep.subr.mxu0 0.0
  %576 = vmatpush1.msra.mxu0 0.0
  %577 = vmatprep.subr.mxu0 0.0
  %578 = vmatpush1.msra.mxu0 0.0
  %579 = vmatprep.subr.mxu0 0.0
  %580 = vmatpush1.msra.mxu0 0.0
  %581 = vmatprep.subr.mxu0 0.0
  %582 = vmatpush1.msra.mxu0 0.0
  %583 = vmatprep.subr.mxu0 0.0
  %584 = vmatpush1.msra.mxu0 0.0
  %585 = vmatprep.subr.mxu0 0.0
  %586 = vmatpush1.msra.mxu0 0.0
  %587 = vmatprep.subr.mxu0 0.0
  %588 = vmatpush1.msra.mxu0 0.0
  %589 = vmatprep.subr.mxu0 0.0
  %590 = vmatpush1.msra.mxu0 0.0
  %591 = vmatprep.subr.mxu0 0.0
  %592 = vmatpush1.msra.mxu0 0.0
  %593 = vmatprep.subr.mxu0 0.0
  %594 = vmatpush1.msra.mxu0 0.0
  %595 = vmatprep.subr.mxu0 0.0
  %596 = vmatpush1.msra.mxu0 0.0
  %597 = vmatprep.subr.mxu0 0.0
  %598 = vmatpush1.msra.mxu0 0.0
  %599 = vmatprep.subr.mxu0 0.0
  %600 = vmatpush1.msra.mxu0 0.0
  %601 = vmatprep.subr.mxu0 0.0
  %602 = vmatpush1.msra.mxu0 0.0
  %603 = vmatprep.subr.mxu0 0.0
  %604 = vmatpush1.msra.mxu0 0.0
  %605 = vmatprep.subr.mxu0 0.0
  %606 = vmatpush1.msra.mxu0 0.0
  %607 = vmatprep.subr.mxu0 0.0
  %608 = vmatpush1.msra.mxu0 0.0
  %609 = vmatprep.subr.mxu0 0.0
  %610 = vmatpush1.msra.mxu0 0.0
  %611 = vmatprep.subr.mxu0 0.0
  %612 = vmatpush1.msra.mxu0 0.0
  %613 = vmatprep.subr.mxu0 0.0
  %614 = vmatpush1.msra.mxu0 0.0
  %615 = vmatprep.subr.mxu0 0.0
  %616 = vmatpush1.msra.mxu0 0.0
  %617 = vmatprep.subr.mxu0 0.0
  %618 = vmatpush1.msra.mxu0 0.0
  %619 = vmatprep.subr.mxu0 0.0
  %620 = vmatpush1.msra.mxu0 0.0
  %621 = vmatprep.subr.mxu0 0.0
  %622 = vmatpush1.msra.mxu0 0.0
  %623 = vmatprep.subr.mxu0 0.0
  %624 = vmatpush1.msra.mxu0 0.0
  %625 = vmatprep.subr.mxu0 0.0
  %626 = vmatpush1.msra.mxu0 0.0
  %627 = vmatprep.subr.mxu0 0.0
  %628 = vmatpush1.msra.mxu0 0.0
  %629 = vmatprep.subr.mxu0 0.0
  %630 = vmatpush1.msra.mxu0 0.0
  %631 = vmatprep.subr.mxu0 0.0
  %632 = vmatpush1.msra.mxu0 0.0
  %633 = vmatprep.mubr.f32.mxu0 0.0
  %634 = vmatmul.mubr.f32.gmra.mrb[0].mxu0 %v484
  %v635 = vpop.f32.mrb[0].mxu0
  %v636 = vadd.f32 0.0, %v635
  %v637 = vpop.f32.mrb[0].mxu0
  %v638 = vadd.f32 0.0, %v637
  %639 = vdwg.mxu0
  %v640 = vadd.f32 %v374, %v565
  %v641 = vadd.f32 %v376, %v567
  %v642 = vadd.f32 %v445, %v636
  %v643 = vadd.f32 %v447, %v638
  %644 = vrot.lane.b32.xlu0 %v44, 1
  %v645 = vpop.permute.xlu0 %644
  %646 = vrot.lane.b32.xlu0 %v65, 1
  %v647 = vpop.permute.xlu0 %646
  %648 = vrot.lane.b32.xlu0 %v45, 1
  %v649 = vpop.permute.xlu0 %648
  %650 = vrot.lane.b32.xlu0 %v66, 1
  %v651 = vpop.permute.xlu0 %650
  %vm652 = vcmp.lt.s32.totalorder %v47, 1
  %v653 = vsel %vm652, %v649, %v651
  %v654 = vsel %vm652, %v647, %v649
  %v655 = vsel %vm652, %v645, %v647
  %v656 = vsel %vm652, %v651, %v645
  %v657 = vsel %vm86, 1, 0
  %v658 = vsel %vm87, 1, 0
  %v659 = vsel %vm88, 1, 0
  %v660 = vsel %vm89, 1, 0
  %vm661 = vcmp.eq.s32.totalorder %v657, 1
  %vm662 = vcmp.eq.s32.totalorder %v658, 1
  %vm663 = vcmp.eq.s32.totalorder %v659, 1
  %vm664 = vcmp.eq.s32.totalorder %v660, 1
  %v665 = vsel %vm661, %v656, 0.0
  %v666 = vsel %vm662, %v655, 0.0
  %v667 = vsel %vm663, %v654, 0.0
  %v668 = vsel %vm664, %v653, 0.0
  %v669 = vld [vmem:[%s2 + $0x18] sm:$0xff]
  %v671 = vsel %vm133, %v669, 0
  %v674 = vsel %vm137, %v665, 0
  %v677 = vsel %vm137, %v666, 0
  %v680 = vsel %vm137, %v667, 0
  %v683 = vsel %vm137, %v668, 0
  %685 = vmatprep.subr.mxu0 %v677
  %686 = vmatpush1.msra.mxu0 %v674
  %687 = vmatprep.subr.mxu0 0.0
  %688 = vmatpush1.msra.mxu0 0.0
  %689 = vmatprep.subr.mxu0 0.0
  %690 = vmatpush1.msra.mxu0 0.0
  %691 = vmatprep.subr.mxu0 0.0
  %692 = vmatpush1.msra.mxu0 0.0
  %693 = vmatprep.subr.mxu0 0.0
  %694 = vmatpush1.msra.mxu0 0.0
  %695 = vmatprep.subr.mxu0 0.0
  %696 = vmatpush1.msra.mxu0 0.0
  %697 = vmatprep.subr.mxu0 0.0
  %698 = vmatpush1.msra.mxu0 0.0
  %699 = vmatprep.subr.mxu0 0.0
  %700 = vmatpush1.msra.mxu0 0.0
  %701 = vmatprep.subr.mxu0 0.0
  %702 = vmatpush1.msra.mxu0 0.0
  %703 = vmatprep.subr.mxu0 0.0
  %704 = vmatpush1.msra.mxu0 0.0
  %705 = vmatprep.subr.mxu0 0.0
  %706 = vmatpush1.msra.mxu0 0.0
  %707 = vmatprep.subr.mxu0 0.0
  %708 = vmatpush1.msra.mxu0 0.0
  %709 = vmatprep.subr.mxu0 0.0
  %710 = vmatpush1.msra.mxu0 0.0
  %711 = vmatprep.subr.mxu0 0.0
  %712 = vmatpush1.msra.mxu0 0.0
  %713 = vmatprep.subr.mxu0 0.0
  %714 = vmatpush1.msra.mxu0 0.0
  %715 = vmatprep.subr.mxu0 0.0
  %716 = vmatpush1.msra.mxu0 0.0
  %717 = vmatprep.subr.mxu0 0.0
  %718 = vmatpush1.msra.mxu0 0.0
  %719 = vmatprep.subr.mxu0 0.0
  %720 = vmatpush1.msra.mxu0 0.0
  %721 = vmatprep.subr.mxu0 0.0
  %722 = vmatpush1.msra.mxu0 0.0
  %723 = vmatprep.subr.mxu0 0.0
  %724 = vmatpush1.msra.mxu0 0.0
  %725 = vmatprep.subr.mxu0 0.0
  %726 = vmatpush1.msra.mxu0 0.0
  %727 = vmatprep.subr.mxu0 0.0
  %728 = vmatpush1.msra.mxu0 0.0
  %729 = vmatprep.subr.mxu0 0.0
  %730 = vmatpush1.msra.mxu0 0.0
  %731 = vmatprep.subr.mxu0 0.0
  %732 = vmatpush1.msra.mxu0 0.0
  %733 = vmatprep.subr.mxu0 0.0
  %734 = vmatpush1.msra.mxu0 0.0
  %735 = vmatprep.subr.mxu0 0.0
  %736 = vmatpush1.msra.mxu0 0.0
  %737 = vmatprep.subr.mxu0 0.0
  %738 = vmatpush1.msra.mxu0 0.0
  %739 = vmatprep.subr.mxu0 0.0
  %740 = vmatpush1.msra.mxu0 0.0
  %741 = vmatprep.subr.mxu0 0.0
  %742 = vmatpush1.msra.mxu0 0.0
  %743 = vmatprep.subr.mxu0 0.0
  %744 = vmatpush1.msra.mxu0 0.0
  %745 = vmatprep.subr.mxu0 0.0
  %746 = vmatpush1.msra.mxu0 0.0
  %747 = vmatprep.subr.mxu0 0.0
  %748 = vmatpush1.msra.mxu0 0.0
  %749 = vmatprep.mubr.f32.mxu0 0.0
  %750 = vmatmul.mubr.f32.gmra.mrb[0].mxu0 %v671
  %v751 = vpop.f32.mrb[0].mxu0
  %v752 = vadd.f32 0.0, %v751
  %v753 = vpop.f32.mrb[0].mxu0
  %v754 = vadd.f32 0.0, %v753
  %755 = vdwg.mxu0
  %756 = vmatprep.subr.mxu0 %v683
  %757 = vmatpush1.msra.mxu0 %v680
  %758 = vmatprep.subr.mxu0 0.0
  %759 = vmatpush1.msra.mxu0 0.0
  %760 = vmatprep.subr.mxu0 0.0
  %761 = vmatpush1.msra.mxu0 0.0
  %762 = vmatprep.subr.mxu0 0.0
  %763 = vmatpush1.msra.mxu0 0.0
  %764 = vmatprep.subr.mxu0 0.0
  %765 = vmatpush1.msra.mxu0 0.0
  %766 = vmatprep.subr.mxu0 0.0
  %767 = vmatpush1.msra.mxu0 0.0
  %768 = vmatprep.subr.mxu0 0.0
  %769 = vmatpush1.msra.mxu0 0.0
  %770 = vmatprep.subr.mxu0 0.0
  %771 = vmatpush1.msra.mxu0 0.0
  %772 = vmatprep.subr.mxu0 0.0
  %773 = vmatpush1.msra.mxu0 0.0
  %774 = vmatprep.subr.mxu0 0.0
  %775 = vmatpush1.msra.mxu0 0.0
  %776 = vmatprep.subr.mxu0 0.0
  %777 = vmatpush1.msra.mxu0 0.0
  %778 = vmatprep.subr.mxu0 0.0
  %779 = vmatpush1.msra.mxu0 0.0
  %780 = vmatprep.subr.mxu0 0.0
  %781 = vmatpush1.msra.mxu0 0.0
  %782 = vmatprep.subr.mxu0 0.0
  %783 = vmatpush1.msra.mxu0 0.0
  %784 = vmatprep.subr.mxu0 0.0
  %785 = vmatpush1.msra.mxu0 0.0
  %786 = vmatprep.subr.mxu0 0.0
  %787 = vmatpush1.msra.mxu0 0.0
  %788 = vmatprep.subr.mxu0 0.0
  %789 = vmatpush1.msra.mxu0 0.0
  %790 = vmatprep.subr.mxu0 0.0
  %791 = vmatpush1.msra.mxu0 0.0
  %792 = vmatprep.subr.mxu0 0.0
  %793 = vmatpush1.msra.mxu0 0.0
  %794 = vmatprep.subr.mxu0 0.0
  %795 = vmatpush1.msra.mxu0 0.0
  %796 = vmatprep.subr.mxu0 0.0
  %797 = vmatpush1.msra.mxu0 0.0
  %798 = vmatprep.subr.mxu0 0.0
  %799 = vmatpush1.msra.mxu0 0.0
  %800 = vmatprep.subr.mxu0 0.0
  %801 = vmatpush1.msra.mxu0 0.0
  %802 = vmatprep.subr.mxu0 0.0
  %803 = vmatpush1.msra.mxu0 0.0
  %804 = vmatprep.subr.mxu0 0.0
  %805 = vmatpush1.msra.mxu0 0.0
  %806 = vmatprep.subr.mxu0 0.0
  %807 = vmatpush1.msra.mxu0 0.0
  %808 = vmatprep.subr.mxu0 0.0
  %809 = vmatpush1.msra.mxu0 0.0
  %810 = vmatprep.subr.mxu0 0.0
  %811 = vmatpush1.msra.mxu0 0.0
  %812 = vmatprep.subr.mxu0 0.0
  %813 = vmatpush1.msra.mxu0 0.0
  %814 = vmatprep.subr.mxu0 0.0
  %815 = vmatpush1.msra.mxu0 0.0
  %816 = vmatprep.subr.mxu0 0.0
  %817 = vmatpush1.msra.mxu0 0.0
  %818 = vmatprep.subr.mxu0 0.0
  %819 = vmatpush1.msra.mxu0 0.0
  %820 = vmatprep.mubr.f32.mxu0 0.0
  %821 = vmatmul.mubr.f32.gmra.mrb[0].mxu0 %v671
  %v822 = vpop.f32.mrb[0].mxu0
  %v823 = vadd.f32 0.0, %v822
  %v824 = vpop.f32.mrb[0].mxu0
  %v825 = vadd.f32 0.0, %v824
  %826 = vdwg.mxu0
  %v827 = vadd.f32 %v640, %v752
  %v828 = vadd.f32 %v641, %v754
  %v829 = vadd.f32 %v642, %v823
  %v830 = vadd.f32 %v643, %v825
  %v831 = vld [vmem:[%s2 + $0x20] sm:$0xff]
  %v833 = vsel %vm133, %v831, 0
  %v835 = vsel %vm137, %v44, 0
  %v837 = vsel %vm137, %v65, 0
  %v839 = vsel %vm137, %v45, 0
  %v841 = vsel %vm137, %v66, 0
  %843 = vmatprep.subr.mxu0 %v837
  %844 = vmatpush1.msra.mxu0 %v835
  %845 = vmatprep.subr.mxu0 0.0
  %846 = vmatpush1.msra.mxu0 0.0
  %847 = vmatprep.subr.mxu0 0.0
  %848 = vmatpush1.msra.mxu0 0.0
  %849 = vmatprep.subr.mxu0 0.0
  %850 = vmatpush1.msra.mxu0 0.0
  %851 = vmatprep.subr.mxu0 0.0
  %852 = vmatpush1.msra.mxu0 0.0
  %853 = vmatprep.subr.mxu0 0.0
  %854 = vmatpush1.msra.mxu0 0.0
  %855 = vmatprep.subr.mxu0 0.0
  %856 = vmatpush1.msra.mxu0 0.0
  %857 = vmatprep.subr.mxu0 0.0
  %858 = vmatpush1.msra.mxu0 0.0
  %859 = vmatprep.subr.mxu0 0.0
  %860 = vmatpush1.msra.mxu0 0.0
  %861 = vmatprep.subr.mxu0 0.0
  %862 = vmatpush1.msra.mxu0 0.0
  %863 = vmatprep.subr.mxu0 0.0
  %864 = vmatpush1.msra.mxu0 0.0
  %865 = vmatprep.subr.mxu0 0.0
  %866 = vmatpush1.msra.mxu0 0.0
  %867 = vmatprep.subr.mxu0 0.0
  %868 = vmatpush1.msra.mxu0 0.0
  %869 = vmatprep.subr.mxu0 0.0
  %870 = vmatpush1.msra.mxu0 0.0
  %871 = vmatprep.subr.mxu0 0.0
  %872 = vmatpush1.msra.mxu0 0.0
  %873 = vmatprep.subr.mxu0 0.0
  %874 = vmatpush1.msra.mxu0 0.0
  %875 = vmatprep.subr.mxu0 0.0
  %876 = vmatpush1.msra.mxu0 0.0
  %877 = vmatprep.subr.mxu0 0.0
  %878 = vmatpush1.msra.mxu0 0.0
  %879 = vmatprep.subr.mxu0 0.0
  %880 = vmatpush1.msra.mxu0 0.0
  %881 = vmatprep.subr.mxu0 0.0
  %882 = vmatpush1.msra.mxu0 0.0
  %883 = vmatprep.subr.mxu0 0.0
  %884 = vmatpush1.msra.mxu0 0.0
  %885 = vmatprep.subr.mxu0 0.0
  %886 = vmatpush1.msra.mxu0 0.0
  %887 = vmatprep.subr.mxu0 0.0
  %888 = vmatpush1.msra.mxu0 0.0
  %889 = vmatprep.subr.mxu0 0.0
  %890 = vmatpush1.msra.mxu0 0.0
  %891 = vmatprep.subr.mxu0 0.0
  %892 = vmatpush1.msra.mxu0 0.0
  %893 = vmatprep.subr.mxu0 0.0
  %894 = vmatpush1.msra.mxu0 0.0
  %895 = vmatprep.subr.mxu0 0.0
  %896 = vmatpush1.msra.mxu0 0.0
  %897 = vmatprep.subr.mxu0 0.0
  %898 = vmatpush1.msra.mxu0 0.0
  %899 = vmatprep.subr.mxu0 0.0
  %900 = vmatpush1.msra.mxu0 0.0
  %901 = vmatprep.subr.mxu0 0.0
  %902 = vmatpush1.msra.mxu0 0.0
  %903 = vmatprep.subr.mxu0 0.0
  %904 = vmatpush1.msra.mxu0 0.0
  %905 = vmatprep.subr.mxu0 0.0
  %906 = vmatpush1.msra.mxu0 0.0
  %907 = vmatprep.mubr.f32.mxu0 0.0
  %908 = vmatmul.mubr.f32.gmra.mrb[0].mxu0 %v833
  %v909 = vpop.f32.mrb[0].mxu0
  %v910 = vadd.f32 0.0, %v909
  %v911 = vpop.f32.mrb[0].mxu0
  %v912 = vadd.f32 0.0, %v911
  %913 = vdwg.mxu0
  %914 = vmatprep.subr.mxu0 %v841
  %915 = vmatpush1.msra.mxu0 %v839
  %916 = vmatprep.subr.mxu0 0.0
  %917 = vmatpush1.msra.mxu0 0.0
  %918 = vmatprep.subr.mxu0 0.0
  %919 = vmatpush1.msra.mxu0 0.0
  %920 = vmatprep.subr.mxu0 0.0
  %921 = vmatpush1.msra.mxu0 0.0
  %922 = vmatprep.subr.mxu0 0.0
  %923 = vmatpush1.msra.mxu0 0.0
  %924 = vmatprep.subr.mxu0 0.0
  %925 = vmatpush1.msra.mxu0 0.0
  %926 = vmatprep.subr.mxu0 0.0
  %927 = vmatpush1.msra.mxu0 0.0
  %928 = vmatprep.subr.mxu0 0.0
  %929 = vmatpush1.msra.mxu0 0.0
  %930 = vmatprep.subr.mxu0 0.0
  %931 = vmatpush1.msra.mxu0 0.0
  %932 = vmatprep.subr.mxu0 0.0
  %933 = vmatpush1.msra.mxu0 0.0
  %934 = vmatprep.subr.mxu0 0.0
  %935 = vmatpush1.msra.mxu0 0.0
  %936 = vmatprep.subr.mxu0 0.0
  %937 = vmatpush1.msra.mxu0 0.0
  %938 = vmatprep.subr.mxu0 0.0
  %939 = vmatpush1.msra.mxu0 0.0
  %940 = vmatprep.subr.mxu0 0.0
  %941 = vmatpush1.msra.mxu0 0.0
  %942 = vmatprep.subr.mxu0 0.0
  %943 = vmatpush1.msra.mxu0 0.0
  %944 = vmatprep.subr.mxu0 0.0
  %945 = vmatpush1.msra.mxu0 0.0
  %946 = vmatprep.subr.mxu0 0.0
  %947 = vmatpush1.msra.mxu0 0.0
  %948 = vmatprep.subr.mxu0 0.0
  %949 = vmatpush1.msra.mxu0 0.0
  %950 = vmatprep.subr.mxu0 0.0
  %951 = vmatpush1.msra.mxu0 0.0
  %952 = vmatprep.subr.mxu0 0.0
  %953 = vmatpush1.msra.mxu0 0.0
  %954 = vmatprep.subr.mxu0 0.0
  %955 = vmatpush1.msra.mxu0 0.0
  %956 = vmatprep.subr.mxu0 0.0
  %957 = vmatpush1.msra.mxu0 0.0
  %958 = vmatprep.subr.mxu0 0.0
  %959 = vmatpush1.msra.mxu0 0.0
  %960 = vmatprep.subr.mxu0 0.0
  %961 = vmatpush1.msra.mxu0 0.0
  %962 = vmatprep.subr.mxu0 0.0
  %963 = vmatpush1.msra.mxu0 0.0
  %964 = vmatprep.subr.mxu0 0.0
  %965 = vmatpush1.msra.mxu0 0.0
  %966 = vmatprep.subr.mxu0 0.0
  %967 = vmatpush1.msra.mxu0 0.0
  %968 = vmatprep.subr.mxu0 0.0
  %969 = vmatpush1.msra.mxu0 0.0
  %970 = vmatprep.subr.mxu0 0.0
  %971 = vmatpush1.msra.mxu0 0.0
  %972 = vmatprep.subr.mxu0 0.0
  %973 = vmatpush1.msra.mxu0 0.0
  %974 = vmatprep.subr.mxu0 0.0
  %975 = vmatpush1.msra.mxu0 0.0
  %976 = vmatprep.subr.mxu0 0.0
  %977 = vmatpush1.msra.mxu0 0.0
  %978 = vmatprep.mubr.f32.mxu0 0.0
  %979 = vmatmul.mubr.f32.gmra.mrb[0].mxu0 %v833
  %v980 = vpop.f32.mrb[0].mxu0
  %v981 = vadd.f32 0.0, %v980
  %v982 = vpop.f32.mrb[0].mxu0
  %v983 = vadd.f32 0.0, %v982
  %984 = vdwg.mxu0
  %v985 = vadd.f32 %v827, %v910
  %v986 = vadd.f32 %v828, %v912
  %v987 = vadd.f32 %v829, %v981
  %v988 = vadd.f32 %v830, %v983
  %989 = vrot.lane.b32.xlu0 %v44, 127
  %v990 = vpop.permute.xlu0 %989
  %991 = vrot.lane.b32.xlu0 %v65, 127
  %v992 = vpop.permute.xlu0 %991
  %993 = vrot.lane.b32.xlu0 %v45, 127
  %v994 = vpop.permute.xlu0 %993
  %995 = vrot.lane.b32.xlu0 %v66, 127
  %v996 = vpop.permute.xlu0 %995
  %vm997 = vcmp.lt.s32.totalorder %v47, 127
  %v998 = vsel %vm997, %v994, %v996
  %v999 = vsel %vm997, %v992, %v994
  %v1000 = vsel %vm997, %v990, %v992
  %v1001 = vsel %vm997, %v996, %v990
  %v1002 = vsel %vm462, 1, 0
  %v1003 = vsel %vm463, 1, 0
  %v1004 = vsel %vm464, 1, 0
  %v1005 = vsel %vm465, 1, 0
  %vm1006 = vcmp.eq.s32.totalorder %v1002, 1
  %vm1007 = vcmp.eq.s32.totalorder %v1003, 1
  %vm1008 = vcmp.eq.s32.totalorder %v1004, 1
  %vm1009 = vcmp.eq.s32.totalorder %v1005, 1
  %v1010 = vsel %vm1006, %v1000, 0.0
  %v1011 = vsel %vm1007, %v999, 0.0
  %v1012 = vsel %vm1008, %v998, 0.0
  %v1013 = vsel %vm1009, %v1001, 0.0
  %v1014 = vld [vmem:[%s2 + $0x28] sm:$0xff]
  %v1016 = vsel %vm133, %v1014, 0
  %v1019 = vsel %vm137, %v1010, 0
  %v1022 = vsel %vm137, %v1011, 0
  %v1025 = vsel %vm137, %v1012, 0
  %v1028 = vsel %vm137, %v1013, 0
  %1030 = vmatprep.subr.mxu0 %v1022
  %1031 = vmatpush1.msra.mxu0 %v1019
  %1032 = vmatprep.subr.mxu0 0.0
  %1033 = vmatpush1.msra.mxu0 0.0
  %1034 = vmatprep.subr.mxu0 0.0
  %1035 = vmatpush1.msra.mxu0 0.0
  %1036 = vmatprep.subr.mxu0 0.0
  %1037 = vmatpush1.msra.mxu0 0.0
  %1038 = vmatprep.subr.mxu0 0.0
  %1039 = vmatpush1.msra.mxu0 0.0
  %1040 = vmatprep.subr.mxu0 0.0
  %1041 = vmatpush1.msra.mxu0 0.0
  %1042 = vmatprep.subr.mxu0 0.0
  %1043 = vmatpush1.msra.mxu0 0.0
  %1044 = vmatprep.subr.mxu0 0.0
  %1045 = vmatpush1.msra.mxu0 0.0
  %1046 = vmatprep.subr.mxu0 0.0
  %1047 = vmatpush1.msra.mxu0 0.0
  %1048 = vmatprep.subr.mxu0 0.0
  %1049 = vmatpush1.msra.mxu0 0.0
  %1050 = vmatprep.subr.mxu0 0.0
  %1051 = vmatpush1.msra.mxu0 0.0
  %1052 = vmatprep.subr.mxu0 0.0
  %1053 = vmatpush1.msra.mxu0 0.0
  %1054 = vmatprep.subr.mxu0 0.0
  %1055 = vmatpush1.msra.mxu0 0.0
  %1056 = vmatprep.subr.mxu0 0.0
  %1057 = vmatpush1.msra.mxu0 0.0
  %1058 = vmatprep.subr.mxu0 0.0
  %1059 = vmatpush1.msra.mxu0 0.0
  %1060 = vmatprep.subr.mxu0 0.0
  %1061 = vmatpush1.msra.mxu0 0.0
  %1062 = vmatprep.subr.mxu0 0.0
  %1063 = vmatpush1.msra.mxu0 0.0
  %1064 = vmatprep.subr.mxu0 0.0
  %1065 = vmatpush1.msra.mxu0 0.0
  %1066 = vmatprep.subr.mxu0 0.0
  %1067 = vmatpush1.msra.mxu0 0.0
  %1068 = vmatprep.subr.mxu0 0.0
  %1069 = vmatpush1.msra.mxu0 0.0
  %1070 = vmatprep.subr.mxu0 0.0
  %1071 = vmatpush1.msra.mxu0 0.0
  %1072 = vmatprep.subr.mxu0 0.0
  %1073 = vmatpush1.msra.mxu0 0.0
  %1074 = vmatprep.subr.mxu0 0.0
  %1075 = vmatpush1.msra.mxu0 0.0
  %1076 = vmatprep.subr.mxu0 0.0
  %1077 = vmatpush1.msra.mxu0 0.0
  %1078 = vmatprep.subr.mxu0 0.0
  %1079 = vmatpush1.msra.mxu0 0.0
  %1080 = vmatprep.subr.mxu0 0.0
  %1081 = vmatpush1.msra.mxu0 0.0
  %1082 = vmatprep.subr.mxu0 0.0
  %1083 = vmatpush1.msra.mxu0 0.0
  %1084 = vmatprep.subr.mxu0 0.0
  %1085 = vmatpush1.msra.mxu0 0.0
  %1086 = vmatprep.subr.mxu0 0.0
  %1087 = vmatpush1.msra.mxu0 0.0
  %1088 = vmatprep.subr.mxu0 0.0
  %1089 = vmatpush1.msra.mxu0 0.0
  %1090 = vmatprep.subr.mxu0 0.0
  %1091 = vmatpush1.msra.mxu0 0.0
  %1092 = vmatprep.subr.mxu0 0.0
  %1093 = vmatpush1.msra.mxu0 0.0
  %1094 = vmatprep.mubr.f32.mxu0 0.0
  %1095 = vmatmul.mubr.f32.gmra.mrb[0].mxu0 %v1016
  %v1096 = vpop.f32.mrb[0].mxu0
  %v1097 = vadd.f32 0.0, %v1096
  %v1098 = vpop.f32.mrb[0].mxu0
  %v1099 = vadd.f32 0.0, %v1098
  %1100 = vdwg.mxu0
  %1101 = vmatprep.subr.mxu0 %v1028
  %1102 = vmatpush1.msra.mxu0 %v1025
  %1103 = vmatprep.subr.mxu0 0.0
  %1104 = vmatpush1.msra.mxu0 0.0
  %1105 = vmatprep.subr.mxu0 0.0
  %1106 = vmatpush1.msra.mxu0 0.0
  %1107 = vmatprep.subr.mxu0 0.0
  %1108 = vmatpush1.msra.mxu0 0.0
  %1109 = vmatprep.subr.mxu0 0.0
  %1110 = vmatpush1.msra.mxu0 0.0
  %1111 = vmatprep.subr.mxu0 0.0
  %1112 = vmatpush1.msra.mxu0 0.0
  %1113 = vmatprep.subr.mxu0 0.0
  %1114 = vmatpush1.msra.mxu0 0.0
  %1115 = vmatprep.subr.mxu0 0.0
  %1116 = vmatpush1.msra.mxu0 0.0
  %1117 = vmatprep.subr.mxu0 0.0
  %1118 = vmatpush1.msra.mxu0 0.0
  %1119 = vmatprep.subr.mxu0 0.0
  %1120 = vmatpush1.msra.mxu0 0.0
  %1121 = vmatprep.subr.mxu0 0.0
  %1122 = vmatpush1.msra.mxu0 0.0
  %1123 = vmatprep.subr.mxu0 0.0
  %1124 = vmatpush1.msra.mxu0 0.0
  %1125 = vmatprep.subr.mxu0 0.0
  %1126 = vmatpush1.msra.mxu0 0.0
  %1127 = vmatprep.subr.mxu0 0.0
  %1128 = vmatpush1.msra.mxu0 0.0
  %1129 = vmatprep.subr.mxu0 0.0
  %1130 = vmatpush1.msra.mxu0 0.0
  %1131 = vmatprep.subr.mxu0 0.0
  %1132 = vmatpush1.msra.mxu0 0.0
  %1133 = vmatprep.subr.mxu0 0.0
  %1134 = vmatpush1.msra.mxu0 0.0
  %1135 = vmatprep.subr.mxu0 0.0
  %1136 = vmatpush1.msra.mxu0 0.0
  %1137 = vmatprep.subr.mxu0 0.0
  %1138 = vmatpush1.msra.mxu0 0.0
  %1139 = vmatprep.subr.mxu0 0.0
  %1140 = vmatpush1.msra.mxu0 0.0
  %1141 = vmatprep.subr.mxu0 0.0
  %1142 = vmatpush1.msra.mxu0 0.0
  %1143 = vmatprep.subr.mxu0 0.0
  %1144 = vmatpush1.msra.mxu0 0.0
  %1145 = vmatprep.subr.mxu0 0.0
  %1146 = vmatpush1.msra.mxu0 0.0
  %1147 = vmatprep.subr.mxu0 0.0
  %1148 = vmatpush1.msra.mxu0 0.0
  %1149 = vmatprep.subr.mxu0 0.0
  %1150 = vmatpush1.msra.mxu0 0.0
  %1151 = vmatprep.subr.mxu0 0.0
  %1152 = vmatpush1.msra.mxu0 0.0
  %1153 = vmatprep.subr.mxu0 0.0
  %1154 = vmatpush1.msra.mxu0 0.0
  %1155 = vmatprep.subr.mxu0 0.0
  %1156 = vmatpush1.msra.mxu0 0.0
  %1157 = vmatprep.subr.mxu0 0.0
  %1158 = vmatpush1.msra.mxu0 0.0
  %1159 = vmatprep.subr.mxu0 0.0
  %1160 = vmatpush1.msra.mxu0 0.0
  %1161 = vmatprep.subr.mxu0 0.0
  %1162 = vmatpush1.msra.mxu0 0.0
  %1163 = vmatprep.subr.mxu0 0.0
  %1164 = vmatpush1.msra.mxu0 0.0
  %1165 = vmatprep.mubr.f32.mxu0 0.0
  %1166 = vmatmul.mubr.f32.gmra.mrb[0].mxu0 %v1016
  %v1167 = vpop.f32.mrb[0].mxu0
  %v1168 = vadd.f32 0.0, %v1167
  %v1169 = vpop.f32.mrb[0].mxu0
  %v1170 = vadd.f32 0.0, %v1169
  %1171 = vdwg.mxu0
  %v1172 = vadd.f32 %v985, %v1097
  %v1173 = vadd.f32 %v986, %v1099
  %v1174 = vadd.f32 %v987, %v1168
  %v1175 = vadd.f32 %v988, %v1170
  %1176 = vrot.lane.b32.xlu0 %v44, 113
  %v1177 = vpop.permute.xlu0 %1176
  %1178 = vrot.lane.b32.xlu0 %v65, 113
  %v1179 = vpop.permute.xlu0 %1178
  %1180 = vrot.lane.b32.xlu0 %v45, 113
  %v1181 = vpop.permute.xlu0 %1180
  %1182 = vrot.lane.b32.xlu0 %v66, 113
  %v1183 = vpop.permute.xlu0 %1182
  %vm1184 = vcmp.lt.s32.totalorder %v47, 113
  %v1185 = vsel %vm1184, %v1181, %v1183
  %v1186 = vsel %vm1184, %v1179, %v1181
  %v1187 = vsel %vm1184, %v1177, %v1179
  %v1188 = vsel %vm1184, %v1183, %v1177
  %vm1189 = vcmp.le.s32.totalorder %v59, 14
  %vm1190 = vcmp.le.s32.totalorder %v60, 14
  %vm1191 = vcmp.le.s32.totalorder %v61, 14
  %vm1192 = vcmp.le.s32.totalorder %v62, 14
  %vm1193 = vmand %vm1189, %vm86
  %vm1194 = vmand %vm1190, %vm87
  %vm1195 = vmand %vm1191, %vm88
  %vm1196 = vmand %vm1192, %vm89
  %v1197 = vsel %vm1193, 1, 0
  %v1198 = vsel %vm1194, 1, 0
  %v1199 = vsel %vm1195, 1, 0
  %v1200 = vsel %vm1196, 1, 0
  %vm1201 = vcmp.eq.s32.totalorder %v1197, 1
  %vm1202 = vcmp.eq.s32.totalorder %v1198, 1
  %vm1203 = vcmp.eq.s32.totalorder %v1199, 1
  %vm1204 = vcmp.eq.s32.totalorder %v1200, 1
  %v1205 = vsel %vm1201, %v1187, 0.0
  %v1206 = vsel %vm1202, %v1186, 0.0
  %v1207 = vsel %vm1203, %v1185, 0.0
  %v1208 = vsel %vm1204, %v1188, 0.0
  %v1209 = vld [vmem:[%s2 + $0x30] sm:$0xff]
  %v1211 = vsel %vm133, %v1209, 0
  %v1214 = vsel %vm137, %v1205, 0
  %v1217 = vsel %vm137, %v1206, 0
  %v1220 = vsel %vm137, %v1207, 0
  %v1223 = vsel %vm137, %v1208, 0
  %1225 = vmatprep.subr.mxu0 %v1217
  %1226 = vmatpush1.msra.mxu0 %v1214
  %1227 = vmatprep.subr.mxu0 0.0
  %1228 = vmatpush1.msra.mxu0 0.0
  %1229 = vmatprep.subr.mxu0 0.0
  %1230 = vmatpush1.msra.mxu0 0.0
  %1231 = vmatprep.subr.mxu0 0.0
  %1232 = vmatpush1.msra.mxu0 0.0
  %1233 = vmatprep.subr.mxu0 0.0
  %1234 = vmatpush1.msra.mxu0 0.0
  %1235 = vmatprep.subr.mxu0 0.0
  %1236 = vmatpush1.msra.mxu0 0.0
  %1237 = vmatprep.subr.mxu0 0.0
  %1238 = vmatpush1.msra.mxu0 0.0
  %1239 = vmatprep.subr.mxu0 0.0
  %1240 = vmatpush1.msra.mxu0 0.0
  %1241 = vmatprep.subr.mxu0 0.0
  %1242 = vmatpush1.msra.mxu0 0.0
  %1243 = vmatprep.subr.mxu0 0.0
  %1244 = vmatpush1.msra.mxu0 0.0
  %1245 = vmatprep.subr.mxu0 0.0
  %1246 = vmatpush1.msra.mxu0 0.0
  %1247 = vmatprep.subr.mxu0 0.0
  %1248 = vmatpush1.msra.mxu0 0.0
  %1249 = vmatprep.subr.mxu0 0.0
  %1250 = vmatpush1.msra.mxu0 0.0
  %1251 = vmatprep.subr.mxu0 0.0
  %1252 = vmatpush1.msra.mxu0 0.0
  %1253 = vmatprep.subr.mxu0 0.0
  %1254 = vmatpush1.msra.mxu0 0.0
  %1255 = vmatprep.subr.mxu0 0.0
  %1256 = vmatpush1.msra.mxu0 0.0
  %1257 = vmatprep.subr.mxu0 0.0
  %1258 = vmatpush1.msra.mxu0 0.0
  %1259 = vmatprep.subr.mxu0 0.0
  %1260 = vmatpush1.msra.mxu0 0.0
  %1261 = vmatprep.subr.mxu0 0.0
  %1262 = vmatpush1.msra.mxu0 0.0
  %1263 = vmatprep.subr.mxu0 0.0
  %1264 = vmatpush1.msra.mxu0 0.0
  %1265 = vmatprep.subr.mxu0 0.0
  %1266 = vmatpush1.msra.mxu0 0.0
  %1267 = vmatprep.subr.mxu0 0.0
  %1268 = vmatpush1.msra.mxu0 0.0
  %1269 = vmatprep.subr.mxu0 0.0
  %1270 = vmatpush1.msra.mxu0 0.0
  %1271 = vmatprep.subr.mxu0 0.0
  %1272 = vmatpush1.msra.mxu0 0.0
  %1273 = vmatprep.subr.mxu0 0.0
  %1274 = vmatpush1.msra.mxu0 0.0
  %1275 = vmatprep.subr.mxu0 0.0
  %1276 = vmatpush1.msra.mxu0 0.0
  %1277 = vmatprep.subr.mxu0 0.0
  %1278 = vmatpush1.msra.mxu0 0.0
  %1279 = vmatprep.subr.mxu0 0.0
  %1280 = vmatpush1.msra.mxu0 0.0
  %1281 = vmatprep.subr.mxu0 0.0
  %1282 = vmatpush1.msra.mxu0 0.0
  %1283 = vmatprep.subr.mxu0 0.0
  %1284 = vmatpush1.msra.mxu0 0.0
  %1285 = vmatprep.subr.mxu0 0.0
  %1286 = vmatpush1.msra.mxu0 0.0
  %1287 = vmatprep.subr.mxu0 0.0
  %1288 = vmatpush1.msra.mxu0 0.0
  %1289 = vmatprep.mubr.f32.mxu0 0.0
  %1290 = vmatmul.mubr.f32.gmra.mrb[0].mxu0 %v1211
  %v1291 = vpop.f32.mrb[0].mxu0
  %v1292 = vadd.f32 0.0, %v1291
  %v1293 = vpop.f32.mrb[0].mxu0
  %v1294 = vadd.f32 0.0, %v1293
  %1295 = vdwg.mxu0
  %1296 = vmatprep.subr.mxu0 %v1223
  %1297 = vmatpush1.msra.mxu0 %v1220
  %1298 = vmatprep.subr.mxu0 0.0
  %1299 = vmatpush1.msra.mxu0 0.0
  %1300 = vmatprep.subr.mxu0 0.0
  %1301 = vmatpush1.msra.mxu0 0.0
  %1302 = vmatprep.subr.mxu0 0.0
  %1303 = vmatpush1.msra.mxu0 0.0
  %1304 = vmatprep.subr.mxu0 0.0
  %1305 = vmatpush1.msra.mxu0 0.0
  %1306 = vmatprep.subr.mxu0 0.0
  %1307 = vmatpush1.msra.mxu0 0.0
  %1308 = vmatprep.subr.mxu0 0.0
  %1309 = vmatpush1.msra.mxu0 0.0
  %1310 = vmatprep.subr.mxu0 0.0
  %1311 = vmatpush1.msra.mxu0 0.0
  %1312 = vmatprep.subr.mxu0 0.0
  %1313 = vmatpush1.msra.mxu0 0.0
  %1314 = vmatprep.subr.mxu0 0.0
  %1315 = vmatpush1.msra.mxu0 0.0
  %1316 = vmatprep.subr.mxu0 0.0
  %1317 = vmatpush1.msra.mxu0 0.0
  %1318 = vmatprep.subr.mxu0 0.0
  %1319 = vmatpush1.msra.mxu0 0.0
  %1320 = vmatprep.subr.mxu0 0.0
  %1321 = vmatpush1.msra.mxu0 0.0
  %1322 = vmatprep.subr.mxu0 0.0
  %1323 = vmatpush1.msra.mxu0 0.0
  %1324 = vmatprep.subr.mxu0 0.0
  %1325 = vmatpush1.msra.mxu0 0.0
  %1326 = vmatprep.subr.mxu0 0.0
  %1327 = vmatpush1.msra.mxu0 0.0
  %1328 = vmatprep.subr.mxu0 0.0
  %1329 = vmatpush1.msra.mxu0 0.0
  %1330 = vmatprep.subr.mxu0 0.0
  %1331 = vmatpush1.msra.mxu0 0.0
  %1332 = vmatprep.subr.mxu0 0.0
  %1333 = vmatpush1.msra.mxu0 0.0
  %1334 = vmatprep.subr.mxu0 0.0
  %1335 = vmatpush1.msra.mxu0 0.0
  %1336 = vmatprep.subr.mxu0 0.0
  %1337 = vmatpush1.msra.mxu0 0.0
  %1338 = vmatprep.subr.mxu0 0.0
  %1339 = vmatpush1.msra.mxu0 0.0
  %1340 = vmatprep.subr.mxu0 0.0
  %1341 = vmatpush1.msra.mxu0 0.0
  %1342 = vmatprep.subr.mxu0 0.0
  %1343 = vmatpush1.msra.mxu0 0.0
  %1344 = vmatprep.subr.mxu0 0.0
  %1345 = vmatpush1.msra.mxu0 0.0
  %1346 = vmatprep.subr.mxu0 0.0
  %1347 = vmatpush1.msra.mxu0 0.0
  %1348 = vmatprep.subr.mxu0 0.0
  %1349 = vmatpush1.msra.mxu0 0.0
  %1350 = vmatprep.subr.mxu0 0.0
  %1351 = vmatpush1.msra.mxu0 0.0
  %1352 = vmatprep.subr.mxu0 0.0
  %1353 = vmatpush1.msra.mxu0 0.0
  %1354 = vmatprep.subr.mxu0 0.0
  %1355 = vmatpush1.msra.mxu0 0.0
  %1356 = vmatprep.subr.mxu0 0.0
  %1357 = vmatpush1.msra.mxu0 0.0
  %1358 = vmatprep.subr.mxu0 0.0
  %1359 = vmatpush1.msra.mxu0 0.0
  %1360 = vmatprep.mubr.f32.mxu0 0.0
  %1361 = vmatmul.mubr.f32.gmra.mrb[0].mxu0 %v1211
  %v1362 = vpop.f32.mrb[0].mxu0
  %v1363 = vadd.f32 0.0, %v1362
  %v1364 = vpop.f32.mrb[0].mxu0
  %v1365 = vadd.f32 0.0, %v1364
  %1366 = vdwg.mxu0
  %v1367 = vadd.f32 %v1172, %v1292
  %v1368 = vadd.f32 %v1173, %v1294
  %v1369 = vadd.f32 %v1174, %v1363
  %v1370 = vadd.f32 %v1175, %v1365
  %1371 = vrot.lane.b32.xlu0 %v44, 112
  %v1372 = vpop.permute.xlu0 %1371
  %1373 = vrot.lane.b32.xlu0 %v65, 112
  %v1374 = vpop.permute.xlu0 %1373
  %1375 = vrot.lane.b32.xlu0 %v45, 112
  %v1376 = vpop.permute.xlu0 %1375
  %1377 = vrot.lane.b32.xlu0 %v66, 112
  %v1378 = vpop.permute.xlu0 %1377
  %vm1379 = vcmp.lt.s32.totalorder %v47, 112
  %v1380 = vsel %vm1379, %v1376, %v1378
  %v1381 = vsel %vm1379, %v1374, %v1376
  %v1382 = vsel %vm1379, %v1372, %v1374
  %v1383 = vsel %vm1379, %v1378, %v1372
  %v1384 = vsel %vm1189, 1, 0
  %v1385 = vsel %vm1190, 1, 0
  %v1386 = vsel %vm1191, 1, 0
  %v1387 = vsel %vm1192, 1, 0
  %vm1388 = vcmp.eq.s32.totalorder %v1384, 1
  %vm1389 = vcmp.eq.s32.totalorder %v1385, 1
  %vm1390 = vcmp.eq.s32.totalorder %v1386, 1
  %vm1391 = vcmp.eq.s32.totalorder %v1387, 1
  %v1392 = vsel %vm1388, %v1382, 0.0
  %v1393 = vsel %vm1389, %v1381, 0.0
  %v1394 = vsel %vm1390, %v1380, 0.0
  %v1395 = vsel %vm1391, %v1383, 0.0
  %v1396 = vld [vmem:[%s2 + $0x38] sm:$0xff]
  %v1398 = vsel %vm133, %v1396, 0
  %v1401 = vsel %vm137, %v1392, 0
  %v1404 = vsel %vm137, %v1393, 0
  %v1407 = vsel %vm137, %v1394, 0
  %v1410 = vsel %vm137, %v1395, 0
  %1412 = vmatprep.subr.mxu0 %v1404
  %1413 = vmatpush1.msra.mxu0 %v1401
  %1414 = vmatprep.subr.mxu0 0.0
  %1415 = vmatpush1.msra.mxu0 0.0
  %1416 = vmatprep.subr.mxu0 0.0
  %1417 = vmatpush1.msra.mxu0 0.0
  %1418 = vmatprep.subr.mxu0 0.0
  %1419 = vmatpush1.msra.mxu0 0.0
  %1420 = vmatprep.subr.mxu0 0.0
  %1421 = vmatpush1.msra.mxu0 0.0
  %1422 = vmatprep.subr.mxu0 0.0
  %1423 = vmatpush1.msra.mxu0 0.0
  %1424 = vmatprep.subr.mxu0 0.0
  %1425 = vmatpush1.msra.mxu0 0.0
  %1426 = vmatprep.subr.mxu0 0.0
  %1427 = vmatpush1.msra.mxu0 0.0
  %1428 = vmatprep.subr.mxu0 0.0
  %1429 = vmatpush1.msra.mxu0 0.0
  %1430 = vmatprep.subr.mxu0 0.0
  %1431 = vmatpush1.msra.mxu0 0.0
  %1432 = vmatprep.subr.mxu0 0.0
  %1433 = vmatpush1.msra.mxu0 0.0
  %1434 = vmatprep.subr.mxu0 0.0
  %1435 = vmatpush1.msra.mxu0 0.0
  %1436 = vmatprep.subr.mxu0 0.0
  %1437 = vmatpush1.msra.mxu0 0.0
  %1438 = vmatprep.subr.mxu0 0.0
  %1439 = vmatpush1.msra.mxu0 0.0
  %1440 = vmatprep.subr.mxu0 0.0
  %1441 = vmatpush1.msra.mxu0 0.0
  %1442 = vmatprep.subr.mxu0 0.0
  %1443 = vmatpush1.msra.mxu0 0.0
  %1444 = vmatprep.subr.mxu0 0.0
  %1445 = vmatpush1.msra.mxu0 0.0
  %1446 = vmatprep.subr.mxu0 0.0
  %1447 = vmatpush1.msra.mxu0 0.0
  %1448 = vmatprep.subr.mxu0 0.0
  %1449 = vmatpush1.msra.mxu0 0.0
  %1450 = vmatprep.subr.mxu0 0.0
  %1451 = vmatpush1.msra.mxu0 0.0
  %1452 = vmatprep.subr.mxu0 0.0
  %1453 = vmatpush1.msra.mxu0 0.0
  %1454 = vmatprep.subr.mxu0 0.0
  %1455 = vmatpush1.msra.mxu0 0.0
  %1456 = vmatprep.subr.mxu0 0.0
  %1457 = vmatpush1.msra.mxu0 0.0
  %1458 = vmatprep.subr.mxu0 0.0
  %1459 = vmatpush1.msra.mxu0 0.0
  %1460 = vmatprep.subr.mxu0 0.0
  %1461 = vmatpush1.msra.mxu0 0.0
  %1462 = vmatprep.subr.mxu0 0.0
  %1463 = vmatpush1.msra.mxu0 0.0
  %1464 = vmatprep.subr.mxu0 0.0
  %1465 = vmatpush1.msra.mxu0 0.0
  %1466 = vmatprep.subr.mxu0 0.0
  %1467 = vmatpush1.msra.mxu0 0.0
  %1468 = vmatprep.subr.mxu0 0.0
  %1469 = vmatpush1.msra.mxu0 0.0
  %1470 = vmatprep.subr.mxu0 0.0
  %1471 = vmatpush1.msra.mxu0 0.0
  %1472 = vmatprep.subr.mxu0 0.0
  %1473 = vmatpush1.msra.mxu0 0.0
  %1474 = vmatprep.subr.mxu0 0.0
  %1475 = vmatpush1.msra.mxu0 0.0
  %1476 = vmatprep.mubr.f32.mxu0 0.0
  %1477 = vmatmul.mubr.f32.gmra.mrb[0].mxu0 %v1398
  %v1478 = vpop.f32.mrb[0].mxu0
  %v1479 = vadd.f32 0.0, %v1478
  %v1480 = vpop.f32.mrb[0].mxu0
  %v1481 = vadd.f32 0.0, %v1480
  %1482 = vdwg.mxu0
  %1483 = vmatprep.subr.mxu0 %v1410
  %1484 = vmatpush1.msra.mxu0 %v1407
  %1485 = vmatprep.subr.mxu0 0.0
  %1486 = vmatpush1.msra.mxu0 0.0
  %1487 = vmatprep.subr.mxu0 0.0
  %1488 = vmatpush1.msra.mxu0 0.0
  %1489 = vmatprep.subr.mxu0 0.0
  %1490 = vmatpush1.msra.mxu0 0.0
  %1491 = vmatprep.subr.mxu0 0.0
  %1492 = vmatpush1.msra.mxu0 0.0
  %1493 = vmatprep.subr.mxu0 0.0
  %1494 = vmatpush1.msra.mxu0 0.0
  %1495 = vmatprep.subr.mxu0 0.0
  %1496 = vmatpush1.msra.mxu0 0.0
  %1497 = vmatprep.subr.mxu0 0.0
  %1498 = vmatpush1.msra.mxu0 0.0
  %1499 = vmatprep.subr.mxu0 0.0
  %1500 = vmatpush1.msra.mxu0 0.0
  %1501 = vmatprep.subr.mxu0 0.0
  %1502 = vmatpush1.msra.mxu0 0.0
  %1503 = vmatprep.subr.mxu0 0.0
  %1504 = vmatpush1.msra.mxu0 0.0
  %1505 = vmatprep.subr.mxu0 0.0
  %1506 = vmatpush1.msra.mxu0 0.0
  %1507 = vmatprep.subr.mxu0 0.0
  %1508 = vmatpush1.msra.mxu0 0.0
  %1509 = vmatprep.subr.mxu0 0.0
  %1510 = vmatpush1.msra.mxu0 0.0
  %1511 = vmatprep.subr.mxu0 0.0
  %1512 = vmatpush1.msra.mxu0 0.0
  %1513 = vmatprep.subr.mxu0 0.0
  %1514 = vmatpush1.msra.mxu0 0.0
  %1515 = vmatprep.subr.mxu0 0.0
  %1516 = vmatpush1.msra.mxu0 0.0
  %1517 = vmatprep.subr.mxu0 0.0
  %1518 = vmatpush1.msra.mxu0 0.0
  %1519 = vmatprep.subr.mxu0 0.0
  %1520 = vmatpush1.msra.mxu0 0.0
  %1521 = vmatprep.subr.mxu0 0.0
  %1522 = vmatpush1.msra.mxu0 0.0
  %1523 = vmatprep.subr.mxu0 0.0
  %1524 = vmatpush1.msra.mxu0 0.0
  %1525 = vmatprep.subr.mxu0 0.0
  %1526 = vmatpush1.msra.mxu0 0.0
  %1527 = vmatprep.subr.mxu0 0.0
  %1528 = vmatpush1.msra.mxu0 0.0
  %1529 = vmatprep.subr.mxu0 0.0
  %1530 = vmatpush1.msra.mxu0 0.0
  %1531 = vmatprep.subr.mxu0 0.0
  %1532 = vmatpush1.msra.mxu0 0.0
  %1533 = vmatprep.subr.mxu0 0.0
  %1534 = vmatpush1.msra.mxu0 0.0
  %1535 = vmatprep.subr.mxu0 0.0
  %1536 = vmatpush1.msra.mxu0 0.0
  %1537 = vmatprep.subr.mxu0 0.0
  %1538 = vmatpush1.msra.mxu0 0.0
  %1539 = vmatprep.subr.mxu0 0.0
  %1540 = vmatpush1.msra.mxu0 0.0
  %1541 = vmatprep.subr.mxu0 0.0
  %1542 = vmatpush1.msra.mxu0 0.0
  %1543 = vmatprep.subr.mxu0 0.0
  %1544 = vmatpush1.msra.mxu0 0.0
  %1545 = vmatprep.subr.mxu0 0.0
  %1546 = vmatpush1.msra.mxu0 0.0
  %1547 = vmatprep.mubr.f32.mxu0 0.0
  %1548 = vmatmul.mubr.f32.gmra.mrb[0].mxu0 %v1398
  %v1549 = vpop.f32.mrb[0].mxu0
  %v1550 = vadd.f32 0.0, %v1549
  %v1551 = vpop.f32.mrb[0].mxu0
  %v1552 = vadd.f32 0.0, %v1551
  %1553 = vdwg.mxu0
  %v1554 = vadd.f32 %v1367, %v1479
  %v1555 = vadd.f32 %v1368, %v1481
  %v1556 = vadd.f32 %v1369, %v1550
  %v1557 = vadd.f32 %v1370, %v1552
  %1558 = vrot.lane.b32.xlu0 %v44, 111
  %v1559 = vpop.permute.xlu0 %1558
  %1560 = vrot.lane.b32.xlu0 %v65, 111
  %v1561 = vpop.permute.xlu0 %1560
  %1562 = vrot.lane.b32.xlu0 %v45, 111
  %v1563 = vpop.permute.xlu0 %1562
  %1564 = vrot.lane.b32.xlu0 %v66, 111
  %v1565 = vpop.permute.xlu0 %1564
  %vm1566 = vcmp.lt.s32.totalorder %v47, 111
  %v1567 = vsel %vm1566, %v1563, %v1565
  %v1568 = vsel %vm1566, %v1561, %v1563
  %v1569 = vsel %vm1566, %v1559, %v1561
  %v1570 = vsel %vm1566, %v1565, %v1559
  %vm1571 = vmand %vm1189, %vm462
  %vm1572 = vmand %vm1190, %vm463
  %vm1573 = vmand %vm1191, %vm464
  %vm1574 = vmand %vm1192, %vm465
  %v1575 = vsel %vm1571, 1, 0
  %v1576 = vsel %vm1572, 1, 0
  %v1577 = vsel %vm1573, 1, 0
  %v1578 = vsel %vm1574, 1, 0
  %vm1579 = vcmp.eq.s32.totalorder %v1575, 1
  %vm1580 = vcmp.eq.s32.totalorder %v1576, 1
  %vm1581 = vcmp.eq.s32.totalorder %v1577, 1
  %vm1582 = vcmp.eq.s32.totalorder %v1578, 1
  %v1583 = vsel %vm1579, %v1569, 0.0
  %v1584 = vsel %vm1580, %v1568, 0.0
  %v1585 = vsel %vm1581, %v1567, 0.0
  %v1586 = vsel %vm1582, %v1570, 0.0
  %v1587 = vld [vmem:[%s2 + $0x40] sm:$0xff]
  %v1589 = vsel %vm133, %v1587, 0
  %v1592 = vsel %vm137, %v1583, 0
  %v1595 = vsel %vm137, %v1584, 0
  %v1598 = vsel %vm137, %v1585, 0
  %v1601 = vsel %vm137, %v1586, 0
  %1603 = vmatprep.subr.mxu0 %v1595
  %1604 = vmatpush1.msra.mxu0 %v1592
  %1605 = vmatprep.subr.mxu0 0.0
  %1606 = vmatpush1.msra.mxu0 0.0
  %1607 = vmatprep.subr.mxu0 0.0
  %1608 = vmatpush1.msra.mxu0 0.0
  %1609 = vmatprep.subr.mxu0 0.0
  %1610 = vmatpush1.msra.mxu0 0.0
  %1611 = vmatprep.subr.mxu0 0.0
  %1612 = vmatpush1.msra.mxu0 0.0
  %1613 = vmatprep.subr.mxu0 0.0
  %1614 = vmatpush1.msra.mxu0 0.0
  %1615 = vmatprep.subr.mxu0 0.0
  %1616 = vmatpush1.msra.mxu0 0.0
  %1617 = vmatprep.subr.mxu0 0.0
  %1618 = vmatpush1.msra.mxu0 0.0
  %1619 = vmatprep.subr.mxu0 0.0
  %1620 = vmatpush1.msra.mxu0 0.0
  %1621 = vmatprep.subr.mxu0 0.0
  %1622 = vmatpush1.msra.mxu0 0.0
  %1623 = vmatprep.subr.mxu0 0.0
  %1624 = vmatpush1.msra.mxu0 0.0
  %1625 = vmatprep.subr.mxu0 0.0
  %1626 = vmatpush1.msra.mxu0 0.0
  %1627 = vmatprep.subr.mxu0 0.0
  %1628 = vmatpush1.msra.mxu0 0.0
  %1629 = vmatprep.subr.mxu0 0.0
  %1630 = vmatpush1.msra.mxu0 0.0
  %1631 = vmatprep.subr.mxu0 0.0
  %1632 = vmatpush1.msra.mxu0 0.0
  %1633 = vmatprep.subr.mxu0 0.0
  %1634 = vmatpush1.msra.mxu0 0.0
  %1635 = vmatprep.subr.mxu0 0.0
  %1636 = vmatpush1.msra.mxu0 0.0
  %1637 = vmatprep.subr.mxu0 0.0
  %1638 = vmatpush1.msra.mxu0 0.0
  %1639 = vmatprep.subr.mxu0 0.0
  %1640 = vmatpush1.msra.mxu0 0.0
  %1641 = vmatprep.subr.mxu0 0.0
  %1642 = vmatpush1.msra.mxu0 0.0
  %1643 = vmatprep.subr.mxu0 0.0
  %1644 = vmatpush1.msra.mxu0 0.0
  %1645 = vmatprep.subr.mxu0 0.0
  %1646 = vmatpush1.msra.mxu0 0.0
  %1647 = vmatprep.subr.mxu0 0.0
  %1648 = vmatpush1.msra.mxu0 0.0
  %1649 = vmatprep.subr.mxu0 0.0
  %1650 = vmatpush1.msra.mxu0 0.0
  %1651 = vmatprep.subr.mxu0 0.0
  %1652 = vmatpush1.msra.mxu0 0.0
  %1653 = vmatprep.subr.mxu0 0.0
  %1654 = vmatpush1.msra.mxu0 0.0
  %1655 = vmatprep.subr.mxu0 0.0
  %1656 = vmatpush1.msra.mxu0 0.0
  %1657 = vmatprep.subr.mxu0 0.0
  %1658 = vmatpush1.msra.mxu0 0.0
  %1659 = vmatprep.subr.mxu0 0.0
  %1660 = vmatpush1.msra.mxu0 0.0
  %1661 = vmatprep.subr.mxu0 0.0
  %1662 = vmatpush1.msra.mxu0 0.0
  %1663 = vmatprep.subr.mxu0 0.0
  %1664 = vmatpush1.msra.mxu0 0.0
  %1665 = vmatprep.subr.mxu0 0.0
  %1666 = vmatpush1.msra.mxu0 0.0
  %1667 = vmatprep.mubr.f32.mxu0 0.0
  %1668 = vmatmul.mubr.f32.gmra.mrb[0].mxu0 %v1589
  %v1669 = vpop.f32.mrb[0].mxu0
  %v1670 = vadd.f32 0.0, %v1669
  %v1671 = vpop.f32.mrb[0].mxu0
  %v1672 = vadd.f32 0.0, %v1671
  %1673 = vdwg.mxu0
  %1674 = vmatprep.subr.mxu0 %v1601
  %1675 = vmatpush1.msra.mxu0 %v1598
  %1676 = vmatprep.subr.mxu0 0.0
  %1677 = vmatpush1.msra.mxu0 0.0
  %1678 = vmatprep.subr.mxu0 0.0
  %1679 = vmatpush1.msra.mxu0 0.0
  %1680 = vmatprep.subr.mxu0 0.0
  %1681 = vmatpush1.msra.mxu0 0.0
  %1682 = vmatprep.subr.mxu0 0.0
  %1683 = vmatpush1.msra.mxu0 0.0
  %1684 = vmatprep.subr.mxu0 0.0
  %1685 = vmatpush1.msra.mxu0 0.0
  %1686 = vmatprep.subr.mxu0 0.0
  %1687 = vmatpush1.msra.mxu0 0.0
  %1688 = vmatprep.subr.mxu0 0.0
  %1689 = vmatpush1.msra.mxu0 0.0
  %1690 = vmatprep.subr.mxu0 0.0
  %1691 = vmatpush1.msra.mxu0 0.0
  %1692 = vmatprep.subr.mxu0 0.0
  %1693 = vmatpush1.msra.mxu0 0.0
  %1694 = vmatprep.subr.mxu0 0.0
  %1695 = vmatpush1.msra.mxu0 0.0
  %1696 = vmatprep.subr.mxu0 0.0
  %1697 = vmatpush1.msra.mxu0 0.0
  %1698 = vmatprep.subr.mxu0 0.0
  %1699 = vmatpush1.msra.mxu0 0.0
  %1700 = vmatprep.subr.mxu0 0.0
  %1701 = vmatpush1.msra.mxu0 0.0
  %1702 = vmatprep.subr.mxu0 0.0
  %1703 = vmatpush1.msra.mxu0 0.0
  %1704 = vmatprep.subr.mxu0 0.0
  %1705 = vmatpush1.msra.mxu0 0.0
  %1706 = vmatprep.subr.mxu0 0.0
  %1707 = vmatpush1.msra.mxu0 0.0
  %1708 = vmatprep.subr.mxu0 0.0
  %1709 = vmatpush1.msra.mxu0 0.0
  %1710 = vmatprep.subr.mxu0 0.0
  %1711 = vmatpush1.msra.mxu0 0.0
  %1712 = vmatprep.subr.mxu0 0.0
  %1713 = vmatpush1.msra.mxu0 0.0
  %1714 = vmatprep.subr.mxu0 0.0
  %1715 = vmatpush1.msra.mxu0 0.0
  %1716 = vmatprep.subr.mxu0 0.0
  %1717 = vmatpush1.msra.mxu0 0.0
  %1718 = vmatprep.subr.mxu0 0.0
  %1719 = vmatpush1.msra.mxu0 0.0
  %1720 = vmatprep.subr.mxu0 0.0
  %1721 = vmatpush1.msra.mxu0 0.0
  %1722 = vmatprep.subr.mxu0 0.0
  %1723 = vmatpush1.msra.mxu0 0.0
  %1724 = vmatprep.subr.mxu0 0.0
  %1725 = vmatpush1.msra.mxu0 0.0
  %1726 = vmatprep.subr.mxu0 0.0
  %1727 = vmatpush1.msra.mxu0 0.0
  %1728 = vmatprep.subr.mxu0 0.0
  %1729 = vmatpush1.msra.mxu0 0.0
  %1730 = vmatprep.subr.mxu0 0.0
  %1731 = vmatpush1.msra.mxu0 0.0
  %1732 = vmatprep.subr.mxu0 0.0
  %1733 = vmatpush1.msra.mxu0 0.0
  %1734 = vmatprep.subr.mxu0 0.0
  %1735 = vmatpush1.msra.mxu0 0.0
  %1736 = vmatprep.subr.mxu0 0.0
  %1737 = vmatpush1.msra.mxu0 0.0
  %1738 = vmatprep.mubr.f32.mxu0 0.0
  %1739 = vmatmul.mubr.f32.gmra.mrb[0].mxu0 %v1589
  %v1740 = vpop.f32.mrb[0].mxu0
  %v1741 = vadd.f32 0.0, %v1740
  %v1742 = vpop.f32.mrb[0].mxu0
  %v1743 = vadd.f32 0.0, %v1742
  %1744 = vdwg.mxu0
  %v1745 = vadd.f32 %v1554, %v1670
  %v1746 = vadd.f32 %v1555, %v1672
  %v1747 = vadd.f32 %v1556, %v1741
  %v1748 = vadd.f32 %v1557, %v1743
  %v1751 = vcombine.high %v14, %v14
  %v1752 = vcombine.high %v15, %v15
  %1755 = vst [vmem:[%s3] sm:$0xf] %v14
  %1756 = vst [vmem:[%s3 + $0x8] sm:$0xf] %v1751
  %1757 = vst [vmem:[%s3 + $0x10] sm:$0xf] %v15
  %1758 = vst [vmem:[%s3 + $0x18] sm:$0xf] %v1752
  %v1763 = vrot.slane %v1745, 4
  %v1764 = vrot.slane %v1746, 4
  %v1765 = vrot.slane %v1747, 4
  %v1766 = vrot.slane %v1748, 4
  %1771 = vst [vmem:[%s3] sm:$0xf0] %v1763
  %1772 = vst [vmem:[%s3 + $0x8] sm:$0xf0] %v1764
  %1773 = vst [vmem:[%s3 + $0x10] sm:$0xf0] %v1765
  %1774 = vst [vmem:[%s3 + $0x18] sm:$0xf0] %v1766
  %1775 = vst [vmem:[%s3 + $0x20] sm:$0xf] %v1763
  %1776 = vst [vmem:[%s3 + $0x28] sm:$0xf] %v1764
  %1777 = vst [vmem:[%s3 + $0x30] sm:$0xf] %v1765
  %1778 = vst [vmem:[%s3 + $0x38] sm:$0xf] %v1766
  // Predicated region
  $region14: #{single_layer_forward.1} parent=0 // pred_check
    _
  $region15: #{single_layer_forward.1} parent=0 // pred_check_branch
    %1780 = sbr.rel (0) target = $region17
  $region16: #{single_layer_forward.1} parent=0 // pred_region
    _
  $region17: #{single_layer_forward.1} parent=0 // pred_fallthru
    _
  // Predicated region
  $region18: #{single_layer_forward.1} parent=0 // pred_check
    _
  $region19: #{single_layer_forward.1} parent=0 // pred_check_branch
    %1782 = sbr.rel (0) target = $region21
  $region20: #{single_layer_forward.1} parent=0 // pred_region
    _
  $region21: #{single_layer_forward.1} parent=0 // pred_fallthru
    _

</llo_original>
